<compile_context>
chip_gen: v5e
topology: v5e:2x2
jax: 0.10.0
libtpu: 0.0.40
codegen_flags: <defaults>
</compile_context>

<pallas_src>
import math
import functools

import numpy as np
import jax
import jax.numpy as jnp
from jax.experimental import pallas as pl
from jax.experimental.pallas import tpu as pltpu


# Raw (unfused) parameters, matching the PyTorch module.  All weight matrices are
# stored already transposed, i.e. (in, out), so y = x @ W + b.
PARAM_ORDER = [
    "wql", "bql", "wkl", "bkl", "wvl", "bvl",      # query/key/value Linear (module level)
    "wiq", "biq", "wik", "bik", "wiv", "biv",      # nn.MultiheadAttention in_proj (split)
    "wo", "bo",                                    # nn.MultiheadAttention out_proj
]


def _mha_kernel(x_ref, m_ref,
                wq_ref, bq_ref, wk_ref, bk_ref, wv_ref, bv_ref, wo_ref, bo_ref,
                out_ref, *rest,
                num_heads, block_b, lq, lk, need_weights):
    if need_weights:
        attn_ref, oh_ref = rest          # output ref, then VMEM scratch
    else:
        (oh_ref,) = rest                 # VMEM scratch only

    f32 = jnp.float32
    x = x_ref[...]        # (block_b * lq, D), compute dtype (bf16 or f32)
    mem = m_ref[...]      # (block_b * lk, D)
    cdt = x.dtype
    D = x.shape[-1]
    hd = D // num_heads
    rows = block_b * lq

    # Fused (qkv Linear ∘ in_proj) projections; 1/sqrt(hd) query scale is already
    # folded into wq/bq by the wrapper.  Biases are f32, accumulation is f32.
    q = jnp.dot(x, wq_ref[...], preferred_element_type=f32) + bq_ref[...]
    k = jnp.dot(mem, wk_ref[...], preferred_element_type=f32) + bk_ref[...]
    v = jnp.dot(mem, wv_ref[...], preferred_element_type=f32) + bv_ref[...]

    # Split the leading (row) axis back into (batch, seq); leading-dim split only.
    q3 = q.reshape(block_b, lq, D)
    k3 = k.reshape(block_b, lk, D)
    v3 = v.reshape(block_b, lk, D)

    inv_h = 1.0 / num_heads
    for h in range(num_heads):                 # static unroll over heads (H small)
        lo = h * hd
        qh = q3[:, :, lo:lo + hd].astype(cdt)  # (block_b, lq, hd)
        kh = k3[:, :, lo:lo + hd].astype(cdt)  # (block_b, lk, hd)
        vh = v3[:, :, lo:lo + hd].astype(cdt)  # (block_b, lk, hd)

        s = jnp.einsum('bqd,bkd->bqk', qh, kh, preferred_element_type=f32)
        s = s - jnp.max(s, axis=-1, keepdims=True)
        e = jnp.exp(s)
        p = e * pl.reciprocal(jnp.sum(e, axis=-1, keepdims=True), approx=True)

        if need_weights:
            # Accumulate the head-averaged attention map straight into its output
            # ref (resident in VMEM) -> no extra live f32 (lq, lk) accumulator.
            pa = (p * inv_h).reshape(rows, lk)
            if h == 0:
                attn_ref[...] = pa
            else:
                attn_ref[...] = attn_ref[...] + pa

        oh = jnp.einsum('bqk,bkd->bqd', p.astype(cdt), vh,
                        preferred_element_type=f32)            # (block_b, lq, hd)
        # Write this head's context into VMEM scratch at its static lane offset.
        oh_ref[:, lo:lo + hd] = oh.reshape(rows, hd).astype(oh_ref.dtype)

    # Single out-projection with full contraction depth K = D (instead of H
    # matmuls with K = hd that leave the systolic array mostly idle).
    o = jnp.dot(oh_ref[...], wo_ref[...], preferred_element_type=f32) + bo_ref[...]

    # output_mode == '' with 3-D input  ->  F.softmax(output, dim=1)
    # (softmax over the output_size / Lq axis, per batch element).
    o3 = o.reshape(block_b, lq, D)
    o3 = o3 - jnp.max(o3, axis=1, keepdims=True)
    eo = jnp.exp(o3)
    o3 = eo * pl.reciprocal(jnp.sum(eo, axis=1, keepdims=True), approx=True)

    out_ref[...] = o3.reshape(rows, D).astype(out_ref.dtype)


def _pick_block_batch(B, Lq, Lk, target_rows=512):
    """Number of batch elements processed per grid step.

    Targets block_b*Lq >= 512 rows (tile sweeps show ~85% of roofline at 512 vs
    ~29% at 128) while preferring an EVEN number of grid steps (v7x: 2 TensorCores)
    and respecting the (8,128) block divisibility rule on the flattened slabs.
    """
    divs = [d for d in range(1, B + 1) if B % d == 0]
    ok = [d for d in divs
          if d == B or ((d * Lq) % 8 == 0 and (d * Lk) % 8 == 0)]
    even = [d for d in ok if (B // d) % 2 == 0]
    multi = [d for d in ok if B // d >= 2]
    cands = even or multi or ok
    big = [d for d in cands if d * Lq >= target_rows]
    return min(big) if big else max(cands)


def fuse_params(params, num_heads):
    """Fuse (qkv Linear ∘ in_proj) per stream and fold in the 1/sqrt(hd) scale."""
    D = params["wql"].shape[0]
    scale = 1.0 / math.sqrt(D // num_heads)
    wq = (params["wql"] @ params["wiq"]) * scale
    bq = (params["bql"] @ params["wiq"] + params["biq"]) * scale
    wk = params["wkl"] @ params["wik"]
    bk = params["bkl"] @ params["wik"] + params["bik"]
    wv = params["wvl"] @ params["wiv"]
    bv = params["bvl"] @ params["wiv"] + params["biv"]
    return [wq, bq, wk, bk, wv, bv, params["wo"], params["bo"]]


def multihead_attention_pallas(x, mem, params, num_heads, *,
                               block_b=None,
                               compute_dtype=jnp.bfloat16,
                               need_weights=True):
    B, Lq, D = x.shape
    _, Lk, _ = mem.shape
    assert D % num_heads == 0

    fused = fuse_params(params, num_heads)
    # Matrices (and activations) in compute_dtype (bf16 default: MXU-native on all
    # generations, halves weight/input DMA + VMEM); biases stay f32 and are added
    # to the f32 accumulator.
    mat_idx = (0, 2, 4, 6)
    weights = [w.astype(compute_dtype) if i in mat_idx else w.astype(jnp.float32)
               for i, w in enumerate(fused)]

    if block_b is None:
        block_b = _pick_block_batch(B, Lq, Lk)
    assert B % block_b == 0
    grid = (B // block_b,)
    rows = block_b * Lq

    # Flattened lane/row-dense slabs; reshaped back to (B, L, D) outside the kernel.
    x2 = x.reshape(B * Lq, D).astype(compute_dtype)
    m2 = mem.reshape(B * Lk, D).astype(compute_dtype)

    # --- explicit VMEM budget ------------------------------------------------
    cb = jnp.dtype(compute_dtype).itemsize
    f32b = 4
    in_bytes = 2 * block_b * (Lq + Lk) * D * cb              # double-buffered inputs
    w_bytes = 4 * D * D * cb + 4 * D * f32b                  # weights + biases
    out_bytes = 2 * rows * D * f32b                          # double-buffered output
    if need_weights:
        out_bytes += 2 * rows * Lk * f32b                    # attention-map output
    scratch_bytes = rows * D * cb                            # head-output scratch
    # headroom: q/k/v (f32), one head's s/e/p (f32), output softmax temps
    inter_bytes = (block_b * (Lq + 2 * Lk) * D
                   + 3 * block_b * Lq * Lk + 2 * rows * D) * f32b
    est = in_bytes + 2 * w_bytes + out_bytes + scratch_bytes + inter_bytes
    vmem_limit = int(min(max(2 * est, 32 << 20), 60 << 20))  # stay under v7x 64 MiB

    kernel = functools.partial(_mha_kernel, num_heads=num_heads, block_b=block_b,
                               lq=Lq, lk=Lk, need_weights=need_weights)

    out_shapes = [jax.ShapeDtypeStruct((B * Lq, D), jnp.float32)]
    out_specs = [pl.BlockSpec((rows, D), lambda b: (b, 0))]
    if need_weights:
        out_shapes.append(jax.ShapeDtypeStruct((B * Lq, Lk), jnp.float32))
        out_specs.append(pl.BlockSpec((rows, Lk), lambda b: (b, 0)))

    def _run(single_buffer_weights):
        if single_buffer_weights:
            # Constant index_map -> double-buffering the weights is pure VMEM waste.
            wspecs = [pl.BlockSpec(w.shape, lambda b: (0, 0),
                                   pipeline_mode=pl.Buffered(1)) for w in weights]
        else:
            wspecs = [pl.BlockSpec(w.shape, lambda b: (0, 0)) for w in weights]
        return pl.pallas_call(
            kernel,
            out_shape=tuple(out_shapes),
            grid_spec=pltpu.PrefetchScalarGridSpec(
                num_scalar_prefetch=0,
                grid=grid,
                in_specs=[
                    pl.BlockSpec((rows, D), lambda b: (b, 0)),
                    pl.BlockSpec((block_b * Lk, D), lambda b: (b, 0)),
                ] + wspecs,
                out_specs=tuple(out_specs),
                scratch_shapes=[pltpu.VMEM((rows, D), compute_dtype)],
            ),
            compiler_params=pltpu.CompilerParams(
                dimension_semantics=("parallel",),
                vmem_limit_bytes=vmem_limit),
        )(x2, m2, *weights)

    try:
        results = _run(True)
    except Exception:
        # Fallback if pipeline_mode=pl.Buffered(1) is unavailable in this runtime.
        results = _run(False)

    if need_weights:
        out2, attn2 = results
        return out2.reshape(B, Lq, D), attn2.reshape(B, Lq, Lk)
    out2 = results[0] if isinstance(results, (tuple, list)) else results
    return out2.reshape(B, Lq, D), None


def init_params(key, D):
    """Deterministic synthetic parameter init (xavier-uniform weights, small uniform biases)."""
    def xavier(k, shape):
        limit = math.sqrt(6.0 / (shape[0] + shape[1]))
        return jax.random.uniform(k, shape, jnp.float32, -limit, limit)

    def bias(k, D):
        bound = 1.0 / math.sqrt(D)
        return jax.random.uniform(k, (1, D), jnp.float32, -bound, bound)

    keys = jax.random.split(key, len(PARAM_ORDER))
    params = {}
    for name, k in zip(PARAM_ORDER, keys):
        if name.startswith("w"):
            params[name] = xavier(k, (D, D))
        else:
            params[name] = bias(k, D)
    return params


def ref_forward(x, mem, p, H):
    """Pure-JAX reference mirroring the PyTorch forward (default output_mode='').

    Uses the raw, unfused parameters so it also validates the weight fusion."""
    B, Lq, D = x.shape
    Lk = mem.shape[1]
    hd = D // H
    q = x @ p["wql"] + p["bql"]
    k = mem @ p["wkl"] + p["bkl"]
    v = mem @ p["wvl"] + p["bvl"]
    q = q @ p["wiq"] + p["biq"]
    k = k @ p["wik"] + p["bik"]
    v = v @ p["wiv"] + p["biv"]
    qh = q.reshape(B, Lq, H, hd).transpose(0, 2, 1, 3) * (1.0 / math.sqrt(hd))
    kh = k.reshape(B, Lk, H, hd).transpose(0, 2, 1, 3)
    vh = v.reshape(B, Lk, H, hd).transpose(0, 2, 1, 3)
    s = qh @ kh.transpose(0, 1, 3, 2)                      # (B,H,Lq,Lk)
    pr = jax.nn.softmax(s, axis=-1)
    oh = pr @ vh                                           # (B,H,Lq,hd)
    o = oh.transpose(0, 2, 1, 3).reshape(B, Lq, D)
    o = o @ p["wo"] + p["bo"]
    out = jax.nn.softmax(o, axis=1)
    attn = pr.mean(axis=1)
    return out, attn


# TODO(synk): output_mode='concat' branch (Conv1d/BatchNorm1d/AdaptiveAvgPool1d), the other
# optional output modes, dropout and attention masks are dead code for the default config
# and are not implemented.

if __name__ == "__main__":
    B, Lq, Lk, D, H = 2, 8, 16, 32, 4
    key = jax.random.PRNGKey(0)
    kx, km, kp = jax.random.split(key, 3)
    x = jax.random.normal(kx, (B, Lq, D), jnp.float32)
    mem = jax.random.normal(km, (B, Lk, D), jnp.float32)
    params = init_params(kp, D)

    out_ref, attn_ref = ref_forward(x, mem, params, H)

    # f32 operand path: tight check (only approx-reciprocal deviation expected).
    out32, attn32 = multihead_attention_pallas(x, mem, params, H,
                                               compute_dtype=jnp.float32)
    jax.block_until_ready((out32, attn32))
    np.testing.assert_allclose(np.asarray(out32), np.asarray(out_ref), rtol=5e-3, atol=5e-3)
    np.testing.assert_allclose(np.asarray(attn32), np.asarray(attn_ref), rtol=5e-3, atol=5e-3)

    # Default bf16 operand path (f32 accumulation / bias / softmax): looser check.
    out, attn = multihead_attention_pallas(x, mem, params, H)
    jax.block_until_ready((out, attn))
    np.testing.assert_allclose(np.asarray(out), np.asarray(out_ref), rtol=5e-2, atol=5e-2)
    np.testing.assert_allclose(np.asarray(attn), np.asarray(attn_ref), rtol=5e-2, atol=5e-2)

    print("KERNEL_OK")
</pallas_src>

<mosaic_0001>
module attributes {stable_mosaic.version = 11 : i64} {
  func.func @_mha_kernel(%arg0: i32, %arg1: memref<8x32xf32, #tpu.memory_space<vmem>>, %arg2: memref<16x32xf32, #tpu.memory_space<vmem>>, %arg3: memref<32x32xf32, #tpu.memory_space<vmem>>, %arg4: memref<1x32xf32, #tpu.memory_space<vmem>>, %arg5: memref<32x32xf32, #tpu.memory_space<vmem>>, %arg6: memref<1x32xf32, #tpu.memory_space<vmem>>, %arg7: memref<32x32xf32, #tpu.memory_space<vmem>>, %arg8: memref<1x32xf32, #tpu.memory_space<vmem>>, %arg9: memref<32x32xf32, #tpu.memory_space<vmem>>, %arg10: memref<1x32xf32, #tpu.memory_space<vmem>>, %arg11: memref<8x32xf32, #tpu.memory_space<vmem>>, %arg12: memref<8x16xf32, #tpu.memory_space<vmem>>, %arg13: memref<8x32xf32, #tpu.memory_space<vmem>>) attributes {dimension_semantics = [#tpu.dimension_semantics<parallel>], iteration_bounds = array<i64: 2>, scalar_prefetch = 0 : i64, scratch_operands = 1 : i64, tpu.core_type = #tpu.core_type<tc>, window_params = [{transform_indices = @transform_0, window_bounds = array<i64: 8, 32>}, {transform_indices = @transform_1, window_bounds = array<i64: 16, 32>}, {pipeline_mode = #tpu.pipeline_mode<synchronous>, transform_indices = @transform_2, window_bounds = array<i64: 32, 32>}, {pipeline_mode = #tpu.pipeline_mode<synchronous>, transform_indices = @transform_3, window_bounds = array<i64: 1, 32>}, {pipeline_mode = #tpu.pipeline_mode<synchronous>, transform_indices = @transform_4, window_bounds = array<i64: 32, 32>}, {pipeline_mode = #tpu.pipeline_mode<synchronous>, transform_indices = @transform_5, window_bounds = array<i64: 1, 32>}, {pipeline_mode = #tpu.pipeline_mode<synchronous>, transform_indices = @transform_6, window_bounds = array<i64: 32, 32>}, {pipeline_mode = #tpu.pipeline_mode<synchronous>, transform_indices = @transform_7, window_bounds = array<i64: 1, 32>}, {pipeline_mode = #tpu.pipeline_mode<synchronous>, transform_indices = @transform_8, window_bounds = array<i64: 32, 32>}, {pipeline_mode = #tpu.pipeline_mode<synchronous>, transform_indices = @transform_9, window_bounds = array<i64: 1, 32>}, {transform_indices = @transform_10, window_bounds = array<i64: 8, 32>}, {transform_indices = @transform_11, window_bounds = array<i64: 8, 16>}]} {
    %c0 = arith.constant 0 : index
    %c0_0 = arith.constant 0 : index
    %0 = vector.load %arg1[%c0, %c0_0] : memref<8x32xf32, #tpu.memory_space<vmem>>, vector<8x32xf32>
    %c0_1 = arith.constant 0 : index
    %c0_2 = arith.constant 0 : index
    %1 = vector.load %arg2[%c0_1, %c0_2] : memref<16x32xf32, #tpu.memory_space<vmem>>, vector<16x32xf32>
    %c0_3 = arith.constant 0 : index
    %c0_4 = arith.constant 0 : index
    %2 = vector.load %arg3[%c0_3, %c0_4] : memref<32x32xf32, #tpu.memory_space<vmem>>, vector<32x32xf32>
    %cst = arith.constant dense<0.000000e+00> : vector<8x32xf32>
    %3 = tpu.matmul %0, %2, %cst {dimension_numbers = #tpu.dot_dimension_numbers<[1], [0], [0], [1], [0, 0, 1, 1], [], []>} : vector<8x32xf32>, vector<32x32xf32>, vector<8x32xf32> -> vector<8x32xf32>
    %c0_5 = arith.constant 0 : index
    %c0_6 = arith.constant 0 : index
    %4 = vector.load %arg4[%c0_5, %c0_6] : memref<1x32xf32, #tpu.memory_space<vmem>>, vector<1x32xf32>
    %5 = vector.broadcast %4 : vector<1x32xf32> to vector<8x32xf32>
    %6 = arith.addf %3, %5 : vector<8x32xf32>
    %c0_7 = arith.constant 0 : index
    %c0_8 = arith.constant 0 : index
    %7 = vector.load %arg5[%c0_7, %c0_8] : memref<32x32xf32, #tpu.memory_space<vmem>>, vector<32x32xf32>
    %cst_9 = arith.constant dense<0.000000e+00> : vector<16x32xf32>
    %8 = tpu.matmul %1, %7, %cst_9 {dimension_numbers = #tpu.dot_dimension_numbers<[1], [0], [0], [1], [0, 0, 1, 1], [], []>} : vector<16x32xf32>, vector<32x32xf32>, vector<16x32xf32> -> vector<16x32xf32>
    %c0_10 = arith.constant 0 : index
    %c0_11 = arith.constant 0 : index
    %9 = vector.load %arg6[%c0_10, %c0_11] : memref<1x32xf32, #tpu.memory_space<vmem>>, vector<1x32xf32>
    %10 = vector.broadcast %9 : vector<1x32xf32> to vector<16x32xf32>
    %11 = arith.addf %8, %10 : vector<16x32xf32>
    %c0_12 = arith.constant 0 : index
    %c0_13 = arith.constant 0 : index
    %12 = vector.load %arg7[%c0_12, %c0_13] : memref<32x32xf32, #tpu.memory_space<vmem>>, vector<32x32xf32>
    %cst_14 = arith.constant dense<0.000000e+00> : vector<16x32xf32>
    %13 = tpu.matmul %1, %12, %cst_14 {dimension_numbers = #tpu.dot_dimension_numbers<[1], [0], [0], [1], [0, 0, 1, 1], [], []>} : vector<16x32xf32>, vector<32x32xf32>, vector<16x32xf32> -> vector<16x32xf32>
    %c0_15 = arith.constant 0 : index
    %c0_16 = arith.constant 0 : index
    %14 = vector.load %arg8[%c0_15, %c0_16] : memref<1x32xf32, #tpu.memory_space<vmem>>, vector<1x32xf32>
    %15 = vector.broadcast %14 : vector<1x32xf32> to vector<16x32xf32>
    %16 = arith.addf %13, %15 : vector<16x32xf32>
    %17 = vector.shape_cast %6 : vector<8x32xf32> to vector<1x8x32xf32>
    %18 = vector.shape_cast %11 : vector<16x32xf32> to vector<1x16x32xf32>
    %19 = vector.shape_cast %16 : vector<16x32xf32> to vector<1x16x32xf32>
    %20 = vector.extract_strided_slice %17 {offsets = [0, 0, 0], sizes = [1, 8, 8], strides = [1, 1, 1]} : vector<1x8x32xf32> to vector<1x8x8xf32>
    %21 = vector.extract_strided_slice %18 {offsets = [0, 0, 0], sizes = [1, 16, 8], strides = [1, 1, 1]} : vector<1x16x32xf32> to vector<1x16x8xf32>
    %22 = vector.extract_strided_slice %19 {offsets = [0, 0, 0], sizes = [1, 16, 8], strides = [1, 1, 1]} : vector<1x16x32xf32> to vector<1x16x8xf32>
    "tpu.trace_start"() <{level = 10 : i32, message = "bqd,bkd->bqk"}> : () -> ()
    %cst_17 = arith.constant dense<0.000000e+00> : vector<1x8x16xf32>
    %23 = tpu.matmul %20, %21, %cst_17 {dimension_numbers = #tpu.dot_dimension_numbers<[2], [2], [1], [1], [0, 0, 0, 1, 1, 1], [0], [0]>} : vector<1x8x8xf32>, vector<1x16x8xf32>, vector<1x8x16xf32> -> vector<1x8x16xf32>
    "tpu.trace_stop"() : () -> ()
    %cst_18 = arith.constant dense<0xFF800000> : vector<1x8xf32>
    %24 = vector.multi_reduction <maximumf>, %23, %cst_18 [2] : vector<1x8x16xf32> to vector<1x8xf32>
    %25 = vector.shape_cast %24 : vector<1x8xf32> to vector<1x8x1xf32>
    %26 = vector.broadcast %25 : vector<1x8x1xf32> to vector<1x8x16xf32>
    %27 = arith.subf %23, %26 : vector<1x8x16xf32>
    %28 = math.exp %27 : vector<1x8x16xf32>
    %cst_19 = arith.constant dense<0.000000e+00> : vector<1x8xf32>
    %29 = vector.multi_reduction <add>, %28, %cst_19 [2] : vector<1x8x16xf32> to vector<1x8xf32>
    %30 = vector.shape_cast %29 : vector<1x8xf32> to vector<1x8x1xf32>
    %31 = tpu.reciprocal %30 {approx = true} : vector<1x8x1xf32> -> vector<1x8x1xf32>
    %32 = vector.broadcast %31 : vector<1x8x1xf32> to vector<1x8x16xf32>
    %33 = arith.mulf %28, %32 : vector<1x8x16xf32>
    %cst_20 = arith.constant 2.500000e-01 : f32
    %34 = vector.broadcast %cst_20 : f32 to vector<1x8x16xf32>
    %35 = arith.mulf %33, %34 : vector<1x8x16xf32>
    %36 = vector.shape_cast %35 : vector<1x8x16xf32> to vector<8x16xf32>
    %c0_21 = arith.constant 0 : index
    %c0_22 = arith.constant 0 : index
    %37 = vector.load %arg12[%c0_21, %c0_22] : memref<8x16xf32, #tpu.memory_space<vmem>>, vector<8x16xf32>
    tpu.vector_store %arg12[%c0_21, %c0_22], %36 {strides = array<i32>} : memref<8x16xf32, #tpu.memory_space<vmem>>, vector<8x16xf32>,
    "tpu.trace_start"() <{level = 10 : i32, message = "bqk,bkd->bqd"}> : () -> ()
    %cst_23 = arith.constant dense<0.000000e+00> : vector<1x8x8xf32>
    %38 = tpu.matmul %33, %22, %cst_23 {dimension_numbers = #tpu.dot_dimension_numbers<[2], [1], [1], [2], [0, 0, 0, 1, 1, 2], [0], [0]>} : vector<1x8x16xf32>, vector<1x16x8xf32>, vector<1x8x8xf32> -> vector<1x8x8xf32>
    "tpu.trace_stop"() : () -> ()
    %39 = vector.shape_cast %38 : vector<1x8x8xf32> to vector<8x8xf32>
    %c0_24 = arith.constant 0 : index
    %c0_25 = arith.constant 0 : index
    %40 = vector.load %arg13[%c0_24, %c0_25] : memref<8x32xf32, #tpu.memory_space<vmem>>, vector<8x8xf32>
    tpu.vector_store %arg13[%c0_24, %c0_25], %39 {strides = array<i32>} : memref<8x32xf32, #tpu.memory_space<vmem>>, vector<8x8xf32>,
    %41 = vector.extract_strided_slice %17 {offsets = [0, 0, 8], sizes = [1, 8, 8], strides = [1, 1, 1]} : vector<1x8x32xf32> to vector<1x8x8xf32>
    %42 = vector.extract_strided_slice %18 {offsets = [0, 0, 8], sizes = [1, 16, 8], strides = [1, 1, 1]} : vector<1x16x32xf32> to vector<1x16x8xf32>
    %43 = vector.extract_strided_slice %19 {offsets = [0, 0, 8], sizes = [1, 16, 8], strides = [1, 1, 1]} : vector<1x16x32xf32> to vector<1x16x8xf32>
    "tpu.trace_start"() <{level = 10 : i32, message = "bqd,bkd->bqk"}> : () -> ()
    %cst_26 = arith.constant dense<0.000000e+00> : vector<1x8x16xf32>
    %44 = tpu.matmul %41, %42, %cst_26 {dimension_numbers = #tpu.dot_dimension_numbers<[2], [2], [1], [1], [0, 0, 0, 1, 1, 1], [0], [0]>} : vector<1x8x8xf32>, vector<1x16x8xf32>, vector<1x8x16xf32> -> vector<1x8x16xf32>
    "tpu.trace_stop"() : () -> ()
    %cst_27 = arith.constant dense<0xFF800000> : vector<1x8xf32>
    %45 = vector.multi_reduction <maximumf>, %44, %cst_27 [2] : vector<1x8x16xf32> to vector<1x8xf32>
    %46 = vector.shape_cast %45 : vector<1x8xf32> to vector<1x8x1xf32>
    %47 = vector.broadcast %46 : vector<1x8x1xf32> to vector<1x8x16xf32>
    %48 = arith.subf %44, %47 : vector<1x8x16xf32>
    %49 = math.exp %48 : vector<1x8x16xf32>
    %cst_28 = arith.constant dense<0.000000e+00> : vector<1x8xf32>
    %50 = vector.multi_reduction <add>, %49, %cst_28 [2] : vector<1x8x16xf32> to vector<1x8xf32>
    %51 = vector.shape_cast %50 : vector<1x8xf32> to vector<1x8x1xf32>
    %52 = tpu.reciprocal %51 {approx = true} : vector<1x8x1xf32> -> vector<1x8x1xf32>
    %53 = vector.broadcast %52 : vector<1x8x1xf32> to vector<1x8x16xf32>
    %54 = arith.mulf %49, %53 : vector<1x8x16xf32>
    %cst_29 = arith.constant 2.500000e-01 : f32
    %55 = vector.broadcast %cst_29 : f32 to vector<1x8x16xf32>
    %56 = arith.mulf %54, %55 : vector<1x8x16xf32>
    %57 = vector.shape_cast %56 : vector<1x8x16xf32> to vector<8x16xf32>
    %c0_30 = arith.constant 0 : index
    %c0_31 = arith.constant 0 : index
    %58 = vector.load %arg12[%c0_30, %c0_31] : memref<8x16xf32, #tpu.memory_space<vmem>>, vector<8x16xf32>
    %59 = arith.addf %58, %57 : vector<8x16xf32>
    %c0_32 = arith.constant 0 : index
    %c0_33 = arith.constant 0 : index
    %60 = vector.load %arg12[%c0_32, %c0_33] : memref<8x16xf32, #tpu.memory_space<vmem>>, vector<8x16xf32>
    tpu.vector_store %arg12[%c0_32, %c0_33], %59 {strides = array<i32>} : memref<8x16xf32, #tpu.memory_space<vmem>>, vector<8x16xf32>,
    "tpu.trace_start"() <{level = 10 : i32, message = "bqk,bkd->bqd"}> : () -> ()
    %cst_34 = arith.constant dense<0.000000e+00> : vector<1x8x8xf32>
    %61 = tpu.matmul %54, %43, %cst_34 {dimension_numbers = #tpu.dot_dimension_numbers<[2], [1], [1], [2], [0, 0, 0, 1, 1, 2], [0], [0]>} : vector<1x8x16xf32>, vector<1x16x8xf32>, vector<1x8x8xf32> -> vector<1x8x8xf32>
    "tpu.trace_stop"() : () -> ()
    %62 = vector.shape_cast %61 : vector<1x8x8xf32> to vector<8x8xf32>
    %c0_35 = arith.constant 0 : index
    %c8 = arith.constant 8 : index
    %63 = vector.load %arg13[%c0_35, %c8] : memref<8x32xf32, #tpu.memory_space<vmem>>, vector<8x8xf32>
    tpu.vector_store %arg13[%c0_35, %c8], %62 {strides = array<i32>} : memref<8x32xf32, #tpu.memory_space<vmem>>, vector<8x8xf32>,
    %64 = vector.extract_strided_slice %17 {offsets = [0, 0, 16], sizes = [1, 8, 8], strides = [1, 1, 1]} : vector<1x8x32xf32> to vector<1x8x8xf32>
    %65 = vector.extract_strided_slice %18 {offsets = [0, 0, 16], sizes = [1, 16, 8], strides = [1, 1, 1]} : vector<1x16x32xf32> to vector<1x16x8xf32>
    %66 = vector.extract_strided_slice %19 {offsets = [0, 0, 16], sizes = [1, 16, 8], strides = [1, 1, 1]} : vector<1x16x32xf32> to vector<1x16x8xf32>
    "tpu.trace_start"() <{level = 10 : i32, message = "bqd,bkd->bqk"}> : () -> ()
    %cst_36 = arith.constant dense<0.000000e+00> : vector<1x8x16xf32>
    %67 = tpu.matmul %64, %65, %cst_36 {dimension_numbers = #tpu.dot_dimension_numbers<[2], [2], [1], [1], [0, 0, 0, 1, 1, 1], [0], [0]>} : vector<1x8x8xf32>, vector<1x16x8xf32>, vector<1x8x16xf32> -> vector<1x8x16xf32>
    "tpu.trace_stop"() : () -> ()
    %cst_37 = arith.constant dense<0xFF800000> : vector<1x8xf32>
    %68 = vector.multi_reduction <maximumf>, %67, %cst_37 [2] : vector<1x8x16xf32> to vector<1x8xf32>
    %69 = vector.shape_cast %68 : vector<1x8xf32> to vector<1x8x1xf32>
    %70 = vector.broadcast %69 : vector<1x8x1xf32> to vector<1x8x16xf32>
    %71 = arith.subf %67, %70 : vector<1x8x16xf32>
    %72 = math.exp %71 : vector<1x8x16xf32>
    %cst_38 = arith.constant dense<0.000000e+00> : vector<1x8xf32>
    %73 = vector.multi_reduction <add>, %72, %cst_38 [2] : vector<1x8x16xf32> to vector<1x8xf32>
    %74 = vector.shape_cast %73 : vector<1x8xf32> to vector<1x8x1xf32>
    %75 = tpu.reciprocal %74 {approx = true} : vector<1x8x1xf32> -> vector<1x8x1xf32>
    %76 = vector.broadcast %75 : vector<1x8x1xf32> to vector<1x8x16xf32>
    %77 = arith.mulf %72, %76 : vector<1x8x16xf32>
    %cst_39 = arith.constant 2.500000e-01 : f32
    %78 = vector.broadcast %cst_39 : f32 to vector<1x8x16xf32>
    %79 = arith.mulf %77, %78 : vector<1x8x16xf32>
    %80 = vector.shape_cast %79 : vector<1x8x16xf32> to vector<8x16xf32>
    %c0_40 = arith.constant 0 : index
    %c0_41 = arith.constant 0 : index
    %81 = vector.load %arg12[%c0_40, %c0_41] : memref<8x16xf32, #tpu.memory_space<vmem>>, vector<8x16xf32>
    %82 = arith.addf %81, %80 : vector<8x16xf32>
    %c0_42 = arith.constant 0 : index
    %c0_43 = arith.constant 0 : index
    %83 = vector.load %arg12[%c0_42, %c0_43] : memref<8x16xf32, #tpu.memory_space<vmem>>, vector<8x16xf32>
    tpu.vector_store %arg12[%c0_42, %c0_43], %82 {strides = array<i32>} : memref<8x16xf32, #tpu.memory_space<vmem>>, vector<8x16xf32>,
    "tpu.trace_start"() <{level = 10 : i32, message = "bqk,bkd->bqd"}> : () -> ()
    %cst_44 = arith.constant dense<0.000000e+00> : vector<1x8x8xf32>
    %84 = tpu.matmul %77, %66, %cst_44 {dimension_numbers = #tpu.dot_dimension_numbers<[2], [1], [1], [2], [0, 0, 0, 1, 1, 2], [0], [0]>} : vector<1x8x16xf32>, vector<1x16x8xf32>, vector<1x8x8xf32> -> vector<1x8x8xf32>
    "tpu.trace_stop"() : () -> ()
    %85 = vector.shape_cast %84 : vector<1x8x8xf32> to vector<8x8xf32>
    %c0_45 = arith.constant 0 : index
    %c16 = arith.constant 16 : index
    %86 = vector.load %arg13[%c0_45, %c16] : memref<8x32xf32, #tpu.memory_space<vmem>>, vector<8x8xf32>
    tpu.vector_store %arg13[%c0_45, %c16], %85 {strides = array<i32>} : memref<8x32xf32, #tpu.memory_space<vmem>>, vector<8x8xf32>,
    %87 = vector.extract_strided_slice %17 {offsets = [0, 0, 24], sizes = [1, 8, 8], strides = [1, 1, 1]} : vector<1x8x32xf32> to vector<1x8x8xf32>
    %88 = vector.extract_strided_slice %18 {offsets = [0, 0, 24], sizes = [1, 16, 8], strides = [1, 1, 1]} : vector<1x16x32xf32> to vector<1x16x8xf32>
    %89 = vector.extract_strided_slice %19 {offsets = [0, 0, 24], sizes = [1, 16, 8], strides = [1, 1, 1]} : vector<1x16x32xf32> to vector<1x16x8xf32>
    "tpu.trace_start"() <{level = 10 : i32, message = "bqd,bkd->bqk"}> : () -> ()
    %cst_46 = arith.constant dense<0.000000e+00> : vector<1x8x16xf32>
    %90 = tpu.matmul %87, %88, %cst_46 {dimension_numbers = #tpu.dot_dimension_numbers<[2], [2], [1], [1], [0, 0, 0, 1, 1, 1], [0], [0]>} : vector<1x8x8xf32>, vector<1x16x8xf32>, vector<1x8x16xf32> -> vector<1x8x16xf32>
    "tpu.trace_stop"() : () -> ()
    %cst_47 = arith.constant dense<0xFF800000> : vector<1x8xf32>
    %91 = vector.multi_reduction <maximumf>, %90, %cst_47 [2] : vector<1x8x16xf32> to vector<1x8xf32>
    %92 = vector.shape_cast %91 : vector<1x8xf32> to vector<1x8x1xf32>
    %93 = vector.broadcast %92 : vector<1x8x1xf32> to vector<1x8x16xf32>
    %94 = arith.subf %90, %93 : vector<1x8x16xf32>
    %95 = math.exp %94 : vector<1x8x16xf32>
    %cst_48 = arith.constant dense<0.000000e+00> : vector<1x8xf32>
    %96 = vector.multi_reduction <add>, %95, %cst_48 [2] : vector<1x8x16xf32> to vector<1x8xf32>
    %97 = vector.shape_cast %96 : vector<1x8xf32> to vector<1x8x1xf32>
    %98 = tpu.reciprocal %97 {approx = true} : vector<1x8x1xf32> -> vector<1x8x1xf32>
    %99 = vector.broadcast %98 : vector<1x8x1xf32> to vector<1x8x16xf32>
    %100 = arith.mulf %95, %99 : vector<1x8x16xf32>
    %cst_49 = arith.constant 2.500000e-01 : f32
    %101 = vector.broadcast %cst_49 : f32 to vector<1x8x16xf32>
    %102 = arith.mulf %100, %101 : vector<1x8x16xf32>
    %103 = vector.shape_cast %102 : vector<1x8x16xf32> to vector<8x16xf32>
    %c0_50 = arith.constant 0 : index
    %c0_51 = arith.constant 0 : index
    %104 = vector.load %arg12[%c0_50, %c0_51] : memref<8x16xf32, #tpu.memory_space<vmem>>, vector<8x16xf32>
    %105 = arith.addf %104, %103 : vector<8x16xf32>
    %c0_52 = arith.constant 0 : index
    %c0_53 = arith.constant 0 : index
    %106 = vector.load %arg12[%c0_52, %c0_53] : memref<8x16xf32, #tpu.memory_space<vmem>>, vector<8x16xf32>
    tpu.vector_store %arg12[%c0_52, %c0_53], %105 {strides = array<i32>} : memref<8x16xf32, #tpu.memory_space<vmem>>, vector<8x16xf32>,
    "tpu.trace_start"() <{level = 10 : i32, message = "bqk,bkd->bqd"}> : () -> ()
    %cst_54 = arith.constant dense<0.000000e+00> : vector<1x8x8xf32>
    %107 = tpu.matmul %100, %89, %cst_54 {dimension_numbers = #tpu.dot_dimension_numbers<[2], [1], [1], [2], [0, 0, 0, 1, 1, 2], [0], [0]>} : vector<1x8x16xf32>, vector<1x16x8xf32>, vector<1x8x8xf32> -> vector<1x8x8xf32>
    "tpu.trace_stop"() : () -> ()
    %108 = vector.shape_cast %107 : vector<1x8x8xf32> to vector<8x8xf32>
    %c0_55 = arith.constant 0 : index
    %c24 = arith.constant 24 : index
    %109 = vector.load %arg13[%c0_55, %c24] : memref<8x32xf32, #tpu.memory_space<vmem>>, vector<8x8xf32>
    tpu.vector_store %arg13[%c0_55, %c24], %108 {strides = array<i32>} : memref<8x32xf32, #tpu.memory_space<vmem>>, vector<8x8xf32>,
    %c0_56 = arith.constant 0 : index
    %c0_57 = arith.constant 0 : index
    %110 = vector.load %arg13[%c0_56, %c0_57] : memref<8x32xf32, #tpu.memory_space<vmem>>, vector<8x32xf32>
    %c0_58 = arith.constant 0 : index
    %c0_59 = arith.constant 0 : index
    %111 = vector.load %arg9[%c0_58, %c0_59] : memref<32x32xf32, #tpu.memory_space<vmem>>, vector<32x32xf32>
    %cst_60 = arith.constant dense<0.000000e+00> : vector<8x32xf32>
    %112 = tpu.matmul %110, %111, %cst_60 {dimension_numbers = #tpu.dot_dimension_numbers<[1], [0], [0], [1], [0, 0, 1, 1], [], []>} : vector<8x32xf32>, vector<32x32xf32>, vector<8x32xf32> -> vector<8x32xf32>
    %c0_61 = arith.constant 0 : index
    %c0_62 = arith.constant 0 : index
    %113 = vector.load %arg10[%c0_61, %c0_62] : memref<1x32xf32, #tpu.memory_space<vmem>>, vector<1x32xf32>
    %114 = vector.broadcast %113 : vector<1x32xf32> to vector<8x32xf32>
    %115 = arith.addf %112, %114 : vector<8x32xf32>
    %116 = vector.shape_cast %115 : vector<8x32xf32> to vector<1x8x32xf32>
    %cst_63 = arith.constant dense<0xFF800000> : vector<1x32xf32>
    %117 = vector.multi_reduction <maximumf>, %116, %cst_63 [1] : vector<1x8x32xf32> to vector<1x32xf32>
    %118 = vector.shape_cast %117 : vector<1x32xf32> to vector<1x1x32xf32>
    %119 = vector.broadcast %118 : vector<1x1x32xf32> to vector<1x8x32xf32>
    %120 = arith.subf %116, %119 : vector<1x8x32xf32>
    %121 = math.exp %120 : vector<1x8x32xf32>
    %cst_64 = arith.constant dense<0.000000e+00> : vector<1x32xf32>
    %122 = vector.multi_reduction <add>, %121, %cst_64 [1] : vector<1x8x32xf32> to vector<1x32xf32>
    %123 = vector.shape_cast %122 : vector<1x32xf32> to vector<1x1x32xf32>
    %124 = tpu.reciprocal %123 {approx = true} : vector<1x1x32xf32> -> vector<1x1x32xf32>
    %125 = vector.broadcast %124 : vector<1x1x32xf32> to vector<1x8x32xf32>
    %126 = arith.mulf %121, %125 : vector<1x8x32xf32>
    %127 = vector.shape_cast %126 : vector<1x8x32xf32> to vector<8x32xf32>
    %c0_65 = arith.constant 0 : index
    %c0_66 = arith.constant 0 : index
    %128 = vector.load %arg11[%c0_65, %c0_66] : memref<8x32xf32, #tpu.memory_space<vmem>>, vector<8x32xf32>
    tpu.vector_store %arg11[%c0_65, %c0_66], %127 {strides = array<i32>} : memref<8x32xf32, #tpu.memory_space<vmem>>, vector<8x32xf32>,
    return
  }
  func.func @transform_0(%arg0: i32) -> (i32, i32) {
    %c0_i32 = arith.constant 0 : i32
    %c0_i32_0 = arith.constant 0 : i32
    return %arg0, %c0_i32 : i32, i32
  }
  func.func @transform_1(%arg0: i32) -> (i32, i32) {
    %c0_i32 = arith.constant 0 : i32
    %c0_i32_0 = arith.constant 0 : i32
    return %arg0, %c0_i32 : i32, i32
  }
  func.func @transform_2(%arg0: i32) -> (i32, i32) {
    %c0_i32 = arith.constant 0 : i32
    %c0_i32_0 = arith.constant 0 : i32
    %c0_i32_1 = arith.constant 0 : i32
    return %c0_i32, %c0_i32_0 : i32, i32
  }
  func.func @transform_3(%arg0: i32) -> (i32, i32) {
    %c0_i32 = arith.constant 0 : i32
    %c0_i32_0 = arith.constant 0 : i32
    %c0_i32_1 = arith.constant 0 : i32
    return %c0_i32, %c0_i32_0 : i32, i32
  }
  func.func @transform_4(%arg0: i32) -> (i32, i32) {
    %c0_i32 = arith.constant 0 : i32
    %c0_i32_0 = arith.constant 0 : i32
    %c0_i32_1 = arith.constant 0 : i32
    return %c0_i32, %c0_i32_0 : i32, i32
  }
  func.func @transform_5(%arg0: i32) -> (i32, i32) {
    %c0_i32 = arith.constant 0 : i32
    %c0_i32_0 = arith.constant 0 : i32
    %c0_i32_1 = arith.constant 0 : i32
    return %c0_i32, %c0_i32_0 : i32, i32
  }
  func.func @transform_6(%arg0: i32) -> (i32, i32) {
    %c0_i32 = arith.constant 0 : i32
    %c0_i32_0 = arith.constant 0 : i32
    %c0_i32_1 = arith.constant 0 : i32
    return %c0_i32, %c0_i32_0 : i32, i32
  }
  func.func @transform_7(%arg0: i32) -> (i32, i32) {
    %c0_i32 = arith.constant 0 : i32
    %c0_i32_0 = arith.constant 0 : i32
    %c0_i32_1 = arith.constant 0 : i32
    return %c0_i32, %c0_i32_0 : i32, i32
  }
  func.func @transform_8(%arg0: i32) -> (i32, i32) {
    %c0_i32 = arith.constant 0 : i32
    %c0_i32_0 = arith.constant 0 : i32
    %c0_i32_1 = arith.constant 0 : i32
    return %c0_i32, %c0_i32_0 : i32, i32
  }
  func.func @transform_9(%arg0: i32) -> (i32, i32) {
    %c0_i32 = arith.constant 0 : i32
    %c0_i32_0 = arith.constant 0 : i32
    %c0_i32_1 = arith.constant 0 : i32
    return %c0_i32, %c0_i32_0 : i32, i32
  }
  func.func @transform_10(%arg0: i32) -> (i32, i32) {
    %c0_i32 = arith.constant 0 : i32
    %c0_i32_0 = arith.constant 0 : i32
    return %arg0, %c0_i32 : i32, i32
  }
  func.func @transform_11(%arg0: i32) -> (i32, i32) {
    %c0_i32 = arith.constant 0 : i32
    %c0_i32_0 = arith.constant 0 : i32
    return %arg0, %c0_i32 : i32, i32
  }
}

module attributes {stable_mosaic.version = 11 : i64} {
  func.func @_mha_kernel(%arg0: i32, %arg1: memref<8x32xf32, #tpu.memory_space<vmem>>, %arg2: memref<16x32xf32, #tpu.memory_space<vmem>>, %arg3: memref<32x32xf32, #tpu.memory_space<vmem>>, %arg4: memref<1x32xf32, #tpu.memory_space<vmem>>, %arg5: memref<32x32xf32, #tpu.memory_space<vmem>>, %arg6: memref<1x32xf32, #tpu.memory_space<vmem>>, %arg7: memref<32x32xf32, #tpu.memory_space<vmem>>, %arg8: memref<1x32xf32, #tpu.memory_space<vmem>>, %arg9: memref<32x32xf32, #tpu.memory_space<vmem>>, %arg10: memref<1x32xf32, #tpu.memory_space<vmem>>, %arg11: memref<8x32xf32, #tpu.memory_space<vmem>>, %arg12: memref<8x16xf32, #tpu.memory_space<vmem>>, %arg13: memref<8x32xf32, #tpu.memory_space<vmem>>) attributes {dimension_semantics = [#tpu.dimension_semantics<parallel>], iteration_bounds = array<i64: 2>, scalar_prefetch = 0 : i64, scratch_operands = 1 : i64, tpu.core_type = #tpu.core_type<tc>, window_params = [{transform_indices = @transform_0, window_bounds = array<i64: 8, 32>}, {transform_indices = @transform_1, window_bounds = array<i64: 16, 32>}, {pipeline_mode = #tpu.pipeline_mode<synchronous>, transform_indices = @transform_2, window_bounds = array<i64: 32, 32>}, {pipeline_mode = #tpu.pipeline_mode<synchronous>, transform_indices = @transform_3, window_bounds = array<i64: 1, 32>}, {pipeline_mode = #tpu.pipeline_mode<synchronous>, transform_indices = @transform_4, window_bounds = array<i64: 32, 32>}, {pipeline_mode = #tpu.pipeline_mode<synchronous>, transform_indices = @transform_5, window_bounds = array<i64: 1, 32>}, {pipeline_mode = #tpu.pipeline_mode<synchronous>, transform_indices = @transform_6, window_bounds = array<i64: 32, 32>}, {pipeline_mode = #tpu.pipeline_mode<synchronous>, transform_indices = @transform_7, window_bounds = array<i64: 1, 32>}, {pipeline_mode = #tpu.pipeline_mode<synchronous>, transform_indices = @transform_8, window_bounds = array<i64: 32, 32>}, {pipeline_mode = #tpu.pipeline_mode<synchronous>, transform_indices = @transform_9, window_bounds = array<i64: 1, 32>}, {transform_indices = @transform_10, window_bounds = array<i64: 8, 32>}, {transform_indices = @transform_11, window_bounds = array<i64: 8, 16>}]} {
    %c0 = arith.constant 0 : index
    %c0_0 = arith.constant 0 : index
    %0 = vector.load %arg1[%c0, %c0_0] : memref<8x32xf32, #tpu.memory_space<vmem>>, vector<8x32xf32>
    %c0_1 = arith.constant 0 : index
    %c0_2 = arith.constant 0 : index
    %1 = vector.load %arg2[%c0_1, %c0_2] : memref<16x32xf32, #tpu.memory_space<vmem>>, vector<16x32xf32>
    %c0_3 = arith.constant 0 : index
    %c0_4 = arith.constant 0 : index
    %2 = vector.load %arg3[%c0_3, %c0_4] : memref<32x32xf32, #tpu.memory_space<vmem>>, vector<32x32xf32>
    %cst = arith.constant dense<0.000000e+00> : vector<8x32xf32>
    %3 = tpu.matmul %0, %2, %cst {dimension_numbers = #tpu.dot_dimension_numbers<[1], [0], [0], [1], [0, 0, 1, 1], [], []>} : vector<8x32xf32>, vector<32x32xf32>, vector<8x32xf32> -> vector<8x32xf32>
    %c0_5 = arith.constant 0 : index
    %c0_6 = arith.constant 0 : index
    %4 = vector.load %arg4[%c0_5, %c0_6] : memref<1x32xf32, #tpu.memory_space<vmem>>, vector<1x32xf32>
    %5 = vector.broadcast %4 : vector<1x32xf32> to vector<8x32xf32>
    %6 = arith.addf %3, %5 : vector<8x32xf32>
    %c0_7 = arith.constant 0 : index
    %c0_8 = arith.constant 0 : index
    %7 = vector.load %arg5[%c0_7, %c0_8] : memref<32x32xf32, #tpu.memory_space<vmem>>, vector<32x32xf32>
    %cst_9 = arith.constant dense<0.000000e+00> : vector<16x32xf32>
    %8 = tpu.matmul %1, %7, %cst_9 {dimension_numbers = #tpu.dot_dimension_numbers<[1], [0], [0], [1], [0, 0, 1, 1], [], []>} : vector<16x32xf32>, vector<32x32xf32>, vector<16x32xf32> -> vector<16x32xf32>
    %c0_10 = arith.constant 0 : index
    %c0_11 = arith.constant 0 : index
    %9 = vector.load %arg6[%c0_10, %c0_11] : memref<1x32xf32, #tpu.memory_space<vmem>>, vector<1x32xf32>
    %10 = vector.broadcast %9 : vector<1x32xf32> to vector<16x32xf32>
    %11 = arith.addf %8, %10 : vector<16x32xf32>
    %c0_12 = arith.constant 0 : index
    %c0_13 = arith.constant 0 : index
    %12 = vector.load %arg7[%c0_12, %c0_13] : memref<32x32xf32, #tpu.memory_space<vmem>>, vector<32x32xf32>
    %cst_14 = arith.constant dense<0.000000e+00> : vector<16x32xf32>
    %13 = tpu.matmul %1, %12, %cst_14 {dimension_numbers = #tpu.dot_dimension_numbers<[1], [0], [0], [1], [0, 0, 1, 1], [], []>} : vector<16x32xf32>, vector<32x32xf32>, vector<16x32xf32> -> vector<16x32xf32>
    %c0_15 = arith.constant 0 : index
    %c0_16 = arith.constant 0 : index
    %14 = vector.load %arg8[%c0_15, %c0_16] : memref<1x32xf32, #tpu.memory_space<vmem>>, vector<1x32xf32>
    %15 = vector.broadcast %14 : vector<1x32xf32> to vector<16x32xf32>
    %16 = arith.addf %13, %15 : vector<16x32xf32>
    %17 = vector.shape_cast %6 : vector<8x32xf32> to vector<1x8x32xf32>
    %18 = vector.shape_cast %11 : vector<16x32xf32> to vector<1x16x32xf32>
    %19 = vector.shape_cast %16 : vector<16x32xf32> to vector<1x16x32xf32>
    %20 = vector.extract_strided_slice %17 {offsets = [0, 0, 0], sizes = [1, 8, 8], strides = [1, 1, 1]} : vector<1x8x32xf32> to vector<1x8x8xf32>
    %21 = vector.extract_strided_slice %18 {offsets = [0, 0, 0], sizes = [1, 16, 8], strides = [1, 1, 1]} : vector<1x16x32xf32> to vector<1x16x8xf32>
    %22 = vector.extract_strided_slice %19 {offsets = [0, 0, 0], sizes = [1, 16, 8], strides = [1, 1, 1]} : vector<1x16x32xf32> to vector<1x16x8xf32>
    "tpu.trace_start"() <{level = 10 : i32, message = "bqd,bkd->bqk"}> : () -> ()
    %cst_17 = arith.constant dense<0.000000e+00> : vector<1x8x16xf32>
    %23 = tpu.matmul %20, %21, %cst_17 {dimension_numbers = #tpu.dot_dimension_numbers<[2], [2], [1], [1], [0, 0, 0, 1, 1, 1], [0], [0]>} : vector<1x8x8xf32>, vector<1x16x8xf32>, vector<1x8x16xf32> -> vector<1x8x16xf32>
    "tpu.trace_stop"() : () -> ()
    %cst_18 = arith.constant dense<0xFF800000> : vector<1x8xf32>
    %24 = vector.multi_reduction <maximumf>, %23, %cst_18 [2] : vector<1x8x16xf32> to vector<1x8xf32>
    %25 = vector.shape_cast %24 : vector<1x8xf32> to vector<1x8x1xf32>
    %26 = vector.broadcast %25 : vector<1x8x1xf32> to vector<1x8x16xf32>
    %27 = arith.subf %23, %26 : vector<1x8x16xf32>
    %28 = math.exp %27 : vector<1x8x16xf32>
    %cst_19 = arith.constant dense<0.000000e+00> : vector<1x8xf32>
    %29 = vector.multi_reduction <add>, %28, %cst_19 [2] : vector<1x8x16xf32> to vector<1x8xf32>
    %30 = vector.shape_cast %29 : vector<1x8xf32> to vector<1x8x1xf32>
    %31 = tpu.reciprocal %30 {approx = true} : vector<1x8x1xf32> -> vector<1x8x1xf32>
    %32 = vector.broadcast %31 : vector<1x8x1xf32> to vector<1x8x16xf32>
    %33 = arith.mulf %28, %32 : vector<1x8x16xf32>
    %cst_20 = arith.constant 2.500000e-01 : f32
    %34 = vector.broadcast %cst_20 : f32 to vector<1x8x16xf32>
    %35 = arith.mulf %33, %34 : vector<1x8x16xf32>
    %36 = vector.shape_cast %35 : vector<1x8x16xf32> to vector<8x16xf32>
    %c0_21 = arith.constant 0 : index
    %c0_22 = arith.constant 0 : index
    %37 = vector.load %arg12[%c0_21, %c0_22] : memref<8x16xf32, #tpu.memory_space<vmem>>, vector<8x16xf32>
    tpu.vector_store %arg12[%c0_21, %c0_22], %36 {strides = array<i32>} : memref<8x16xf32, #tpu.memory_space<vmem>>, vector<8x16xf32>,
    "tpu.trace_start"() <{level = 10 : i32, message = "bqk,bkd->bqd"}> : () -> ()
    %cst_23 = arith.constant dense<0.000000e+00> : vector<1x8x8xf32>
    %38 = tpu.matmul %33, %22, %cst_23 {dimension_numbers = #tpu.dot_dimension_numbers<[2], [1], [1], [2], [0, 0, 0, 1, 1, 2], [0], [0]>} : vector<1x8x16xf32>, vector<1x16x8xf32>, vector<1x8x8xf32> -> vector<1x8x8xf32>
    "tpu.trace_stop"() : () -> ()
    %39 = vector.shape_cast %38 : vector<1x8x8xf32> to vector<8x8xf32>
    %c0_24 = arith.constant 0 : index
    %c0_25 = arith.constant 0 : index
    %40 = vector.load %arg13[%c0_24, %c0_25] : memref<8x32xf32, #tpu.memory_space<vmem>>, vector<8x8xf32>
    tpu.vector_store %arg13[%c0_24, %c0_25], %39 {strides = array<i32>} : memref<8x32xf32, #tpu.memory_space<vmem>>, vector<8x8xf32>,
    %41 = vector.extract_strided_slice %17 {offsets = [0, 0, 8], sizes = [1, 8, 8], strides = [1, 1, 1]} : vector<1x8x32xf32> to vector<1x8x8xf32>
    %42 = vector.extract_strided_slice %18 {offsets = [0, 0, 8], sizes = [1, 16, 8], strides = [1, 1, 1]} : vector<1x16x32xf32> to vector<1x16x8xf32>
    %43 = vector.extract_strided_slice %19 {offsets = [0, 0, 8], sizes = [1, 16, 8], strides = [1, 1, 1]} : vector<1x16x32xf32> to vector<1x16x8xf32>
    "tpu.trace_start"() <{level = 10 : i32, message = "bqd,bkd->bqk"}> : () -> ()
    %cst_26 = arith.constant dense<0.000000e+00> : vector<1x8x16xf32>
    %44 = tpu.matmul %41, %42, %cst_26 {dimension_numbers = #tpu.dot_dimension_numbers<[2], [2], [1], [1], [0, 0, 0, 1, 1, 1], [0], [0]>} : vector<1x8x8xf32>, vector<1x16x8xf32>, vector<1x8x16xf32> -> vector<1x8x16xf32>
    "tpu.trace_stop"() : () -> ()
    %cst_27 = arith.constant dense<0xFF800000> : vector<1x8xf32>
    %45 = vector.multi_reduction <maximumf>, %44, %cst_27 [2] : vector<1x8x16xf32> to vector<1x8xf32>
    %46 = vector.shape_cast %45 : vector<1x8xf32> to vector<1x8x1xf32>
    %47 = vector.broadcast %46 : vector<1x8x1xf32> to vector<1x8x16xf32>
    %48 = arith.subf %44, %47 : vector<1x8x16xf32>
    %49 = math.exp %48 : vector<1x8x16xf32>
    %cst_28 = arith.constant dense<0.000000e+00> : vector<1x8xf32>
    %50 = vector.multi_reduction <add>, %49, %cst_28 [2] : vector<1x8x16xf32> to vector<1x8xf32>
    %51 = vector.shape_cast %50 : vector<1x8xf32> to vector<1x8x1xf32>
    %52 = tpu.reciprocal %51 {approx = true} : vector<1x8x1xf32> -> vector<1x8x1xf32>
    %53 = vector.broadcast %52 : vector<1x8x1xf32> to vector<1x8x16xf32>
    %54 = arith.mulf %49, %53 : vector<1x8x16xf32>
    %cst_29 = arith.constant 2.500000e-01 : f32
    %55 = vector.broadcast %cst_29 : f32 to vector<1x8x16xf32>
    %56 = arith.mulf %54, %55 : vector<1x8x16xf32>
    %57 = vector.shape_cast %56 : vector<1x8x16xf32> to vector<8x16xf32>
    %c0_30 = arith.constant 0 : index
    %c0_31 = arith.constant 0 : index
    %58 = vector.load %arg12[%c0_30, %c0_31] : memref<8x16xf32, #tpu.memory_space<vmem>>, vector<8x16xf32>
    %59 = arith.addf %58, %57 : vector<8x16xf32>
    %c0_32 = arith.constant 0 : index
    %c0_33 = arith.constant 0 : index
    %60 = vector.load %arg12[%c0_32, %c0_33] : memref<8x16xf32, #tpu.memory_space<vmem>>, vector<8x16xf32>
    tpu.vector_store %arg12[%c0_32, %c0_33], %59 {strides = array<i32>} : memref<8x16xf32, #tpu.memory_space<vmem>>, vector<8x16xf32>,
    "tpu.trace_start"() <{level = 10 : i32, message = "bqk,bkd->bqd"}> : () -> ()
    %cst_34 = arith.constant dense<0.000000e+00> : vector<1x8x8xf32>
    %61 = tpu.matmul %54, %43, %cst_34 {dimension_numbers = #tpu.dot_dimension_numbers<[2], [1], [1], [2], [0, 0, 0, 1, 1, 2], [0], [0]>} : vector<1x8x16xf32>, vector<1x16x8xf32>, vector<1x8x8xf32> -> vector<1x8x8xf32>
    "tpu.trace_stop"() : () -> ()
    %62 = vector.shape_cast %61 : vector<1x8x8xf32> to vector<8x8xf32>
    %c0_35 = arith.constant 0 : index
    %c8 = arith.constant 8 : index
    %63 = vector.load %arg13[%c0_35, %c8] : memref<8x32xf32, #tpu.memory_space<vmem>>, vector<8x8xf32>
    tpu.vector_store %arg13[%c0_35, %c8], %62 {strides = array<i32>} : memref<8x32xf32, #tpu.memory_space<vmem>>, vector<8x8xf32>,
    %64 = vector.extract_strided_slice %17 {offsets = [0, 0, 16], sizes = [1, 8, 8], strides = [1, 1, 1]} : vector<1x8x32xf32> to vector<1x8x8xf32>
    %65 = vector.extract_strided_slice %18 {offsets = [0, 0, 16], sizes = [1, 16, 8], strides = [1, 1, 1]} : vector<1x16x32xf32> to vector<1x16x8xf32>
    %66 = vector.extract_strided_slice %19 {offsets = [0, 0, 16], sizes = [1, 16, 8], strides = [1, 1, 1]} : vector<1x16x32xf32> to vector<1x16x8xf32>
    "tpu.trace_start"() <{level = 10 : i32, message = "bqd,bkd->bqk"}> : () -> ()
    %cst_36 = arith.constant dense<0.000000e+00> : vector<1x8x16xf32>
    %67 = tpu.matmul %64, %65, %cst_36 {dimension_numbers = #tpu.dot_dimension_numbers<[2], [2], [1], [1], [0, 0, 0, 1, 1, 1], [0], [0]>} : vector<1x8x8xf32>, vector<1x16x8xf32>, vector<1x8x16xf32> -> vector<1x8x16xf32>
    "tpu.trace_stop"() : () -> ()
    %cst_37 = arith.constant dense<0xFF800000> : vector<1x8xf32>
    %68 = vector.multi_reduction <maximumf>, %67, %cst_37 [2] : vector<1x8x16xf32> to vector<1x8xf32>
    %69 = vector.shape_cast %68 : vector<1x8xf32> to vector<1x8x1xf32>
    %70 = vector.broadcast %69 : vector<1x8x1xf32> to vector<1x8x16xf32>
    %71 = arith.subf %67, %70 : vector<1x8x16xf32>
    %72 = math.exp %71 : vector<1x8x16xf32>
    %cst_38 = arith.constant dense<0.000000e+00> : vector<1x8xf32>
    %73 = vector.multi_reduction <add>, %72, %cst_38 [2] : vector<1x8x16xf32> to vector<1x8xf32>
    %74 = vector.shape_cast %73 : vector<1x8xf32> to vector<1x8x1xf32>
    %75 = tpu.reciprocal %74 {approx = true} : vector<1x8x1xf32> -> vector<1x8x1xf32>
    %76 = vector.broadcast %75 : vector<1x8x1xf32> to vector<1x8x16xf32>
    %77 = arith.mulf %72, %76 : vector<1x8x16xf32>
    %cst_39 = arith.constant 2.500000e-01 : f32
    %78 = vector.broadcast %cst_39 : f32 to vector<1x8x16xf32>
    %79 = arith.mulf %77, %78 : vector<1x8x16xf32>
    %80 = vector.shape_cast %79 : vector<1x8x16xf32> to vector<8x16xf32>
    %c0_40 = arith.constant 0 : index
    %c0_41 = arith.constant 0 : index
    %81 = vector.load %arg12[%c0_40, %c0_41] : memref<8x16xf32, #tpu.memory_space<vmem>>, vector<8x16xf32>
    %82 = arith.addf %81, %80 : vector<8x16xf32>
    %c0_42 = arith.constant 0 : index
    %c0_43 = arith.constant 0 : index
    %83 = vector.load %arg12[%c0_42, %c0_43] : memref<8x16xf32, #tpu.memory_space<vmem>>, vector<8x16xf32>
    tpu.vector_store %arg12[%c0_42, %c0_43], %82 {strides = array<i32>} : memref<8x16xf32, #tpu.memory_space<vmem>>, vector<8x16xf32>,
    "tpu.trace_start"() <{level = 10 : i32, message = "bqk,bkd->bqd"}> : () -> ()
    %cst_44 = arith.constant dense<0.000000e+00> : vector<1x8x8xf32>
    %84 = tpu.matmul %77, %66, %cst_44 {dimension_numbers = #tpu.dot_dimension_numbers<[2], [1], [1], [2], [0, 0, 0, 1, 1, 2], [0], [0]>} : vector<1x8x16xf32>, vector<1x16x8xf32>, vector<1x8x8xf32> -> vector<1x8x8xf32>
    "tpu.trace_stop"() : () -> ()
    %85 = vector.shape_cast %84 : vector<1x8x8xf32> to vector<8x8xf32>
    %c0_45 = arith.constant 0 : index
    %c16 = arith.constant 16 : index
    %86 = vector.load %arg13[%c0_45, %c16] : memref<8x32xf32, #tpu.memory_space<vmem>>, vector<8x8xf32>
    tpu.vector_store %arg13[%c0_45, %c16], %85 {strides = array<i32>} : memref<8x32xf32, #tpu.memory_space<vmem>>, vector<8x8xf32>,
    %87 = vector.extract_strided_slice %17 {offsets = [0, 0, 24], sizes = [1, 8, 8], strides = [1, 1, 1]} : vector<1x8x32xf32> to vector<1x8x8xf32>
    %88 = vector.extract_strided_slice %18 {offsets = [0, 0, 24], sizes = [1, 16, 8], strides = [1, 1, 1]} : vector<1x16x32xf32> to vector<1x16x8xf32>
    %89 = vector.extract_strided_slice %19 {offsets = [0, 0, 24], sizes = [1, 16, 8], strides = [1, 1, 1]} : vector<1x16x32xf32> to vector<1x16x8xf32>
    "tpu.trace_start"() <{level = 10 : i32, message = "bqd,bkd->bqk"}> : () -> ()
    %cst_46 = arith.constant dense<0.000000e+00> : vector<1x8x16xf32>
    %90 = tpu.matmul %87, %88, %cst_46 {dimension_numbers = #tpu.dot_dimension_numbers<[2], [2], [1], [1], [0, 0, 0, 1, 1, 1], [0], [0]>} : vector<1x8x8xf32>, vector<1x16x8xf32>, vector<1x8x16xf32> -> vector<1x8x16xf32>
    "tpu.trace_stop"() : () -> ()
    %cst_47 = arith.constant dense<0xFF800000> : vector<1x8xf32>
    %91 = vector.multi_reduction <maximumf>, %90, %cst_47 [2] : vector<1x8x16xf32> to vector<1x8xf32>
    %92 = vector.shape_cast %91 : vector<1x8xf32> to vector<1x8x1xf32>
    %93 = vector.broadcast %92 : vector<1x8x1xf32> to vector<1x8x16xf32>
    %94 = arith.subf %90, %93 : vector<1x8x16xf32>
    %95 = math.exp %94 : vector<1x8x16xf32>
    %cst_48 = arith.constant dense<0.000000e+00> : vector<1x8xf32>
    %96 = vector.multi_reduction <add>, %95, %cst_48 [2] : vector<1x8x16xf32> to vector<1x8xf32>
    %97 = vector.shape_cast %96 : vector<1x8xf32> to vector<1x8x1xf32>
    %98 = tpu.reciprocal %97 {approx = true} : vector<1x8x1xf32> -> vector<1x8x1xf32>
    %99 = vector.broadcast %98 : vector<1x8x1xf32> to vector<1x8x16xf32>
    %100 = arith.mulf %95, %99 : vector<1x8x16xf32>
    %cst_49 = arith.constant 2.500000e-01 : f32
    %101 = vector.broadcast %cst_49 : f32 to vector<1x8x16xf32>
    %102 = arith.mulf %100, %101 : vector<1x8x16xf32>
    %103 = vector.shape_cast %102 : vector<1x8x16xf32> to vector<8x16xf32>
    %c0_50 = arith.constant 0 : index
    %c0_51 = arith.constant 0 : index
    %104 = vector.load %arg12[%c0_50, %c0_51] : memref<8x16xf32, #tpu.memory_space<vmem>>, vector<8x16xf32>
    %105 = arith.addf %104, %103 : vector<8x16xf32>
    %c0_52 = arith.constant 0 : index
    %c0_53 = arith.constant 0 : index
    %106 = vector.load %arg12[%c0_52, %c0_53] : memref<8x16xf32, #tpu.memory_space<vmem>>, vector<8x16xf32>
    tpu.vector_store %arg12[%c0_52, %c0_53], %105 {strides = array<i32>} : memref<8x16xf32, #tpu.memory_space<vmem>>, vector<8x16xf32>,
    "tpu.trace_start"() <{level = 10 : i32, message = "bqk,bkd->bqd"}> : () -> ()
    %cst_54 = arith.constant dense<0.000000e+00> : vector<1x8x8xf32>
    %107 = tpu.matmul %100, %89, %cst_54 {dimension_numbers = #tpu.dot_dimension_numbers<[2], [1], [1], [2], [0, 0, 0, 1, 1, 2], [0], [0]>} : vector<1x8x16xf32>, vector<1x16x8xf32>, vector<1x8x8xf32> -> vector<1x8x8xf32>
    "tpu.trace_stop"() : () -> ()
    %108 = vector.shape_cast %107 : vector<1x8x8xf32> to vector<8x8xf32>
    %c0_55 = arith.constant 0 : index
    %c24 = arith.constant 24 : index
    %109 = vector.load %arg13[%c0_55, %c24] : memref<8x32xf32, #tpu.memory_space<vmem>>, vector<8x8xf32>
    tpu.vector_store %arg13[%c0_55, %c24], %108 {strides = array<i32>} : memref<8x32xf32, #tpu.memory_space<vmem>>, vector<8x8xf32>,
    %c0_56 = arith.constant 0 : index
    %c0_57 = arith.constant 0 : index
    %110 = vector.load %arg13[%c0_56, %c0_57] : memref<8x32xf32, #tpu.memory_space<vmem>>, vector<8x32xf32>
    %c0_58 = arith.constant 0 : index
    %c0_59 = arith.constant 0 : index
    %111 = vector.load %arg9[%c0_58, %c0_59] : memref<32x32xf32, #tpu.memory_space<vmem>>, vector<32x32xf32>
    %cst_60 = arith.constant dense<0.000000e+00> : vector<8x32xf32>
    %112 = tpu.matmul %110, %111, %cst_60 {dimension_numbers = #tpu.dot_dimension_numbers<[1], [0], [0], [1], [0, 0, 1, 1], [], []>} : vector<8x32xf32>, vector<32x32xf32>, vector<8x32xf32> -> vector<8x32xf32>
    %c0_61 = arith.constant 0 : index
    %c0_62 = arith.constant 0 : index
    %113 = vector.load %arg10[%c0_61, %c0_62] : memref<1x32xf32, #tpu.memory_space<vmem>>, vector<1x32xf32>
    %114 = vector.broadcast %113 : vector<1x32xf32> to vector<8x32xf32>
    %115 = arith.addf %112, %114 : vector<8x32xf32>
    %116 = vector.shape_cast %115 : vector<8x32xf32> to vector<1x8x32xf32>
    %cst_63 = arith.constant dense<0xFF800000> : vector<1x32xf32>
    %117 = vector.multi_reduction <maximumf>, %116, %cst_63 [1] : vector<1x8x32xf32> to vector<1x32xf32>
    %118 = vector.shape_cast %117 : vector<1x32xf32> to vector<1x1x32xf32>
    %119 = vector.broadcast %118 : vector<1x1x32xf32> to vector<1x8x32xf32>
    %120 = arith.subf %116, %119 : vector<1x8x32xf32>
    %121 = math.exp %120 : vector<1x8x32xf32>
    %cst_64 = arith.constant dense<0.000000e+00> : vector<1x32xf32>
    %122 = vector.multi_reduction <add>, %121, %cst_64 [1] : vector<1x8x32xf32> to vector<1x32xf32>
    %123 = vector.shape_cast %122 : vector<1x32xf32> to vector<1x1x32xf32>
    %124 = tpu.reciprocal %123 {approx = true} : vector<1x1x32xf32> -> vector<1x1x32xf32>
    %125 = vector.broadcast %124 : vector<1x1x32xf32> to vector<1x8x32xf32>
    %126 = arith.mulf %121, %125 : vector<1x8x32xf32>
    %127 = vector.shape_cast %126 : vector<1x8x32xf32> to vector<8x32xf32>
    %c0_65 = arith.constant 0 : index
    %c0_66 = arith.constant 0 : index
    %128 = vector.load %arg11[%c0_65, %c0_66] : memref<8x32xf32, #tpu.memory_space<vmem>>, vector<8x32xf32>
    tpu.vector_store %arg11[%c0_65, %c0_66], %127 {strides = array<i32>} : memref<8x32xf32, #tpu.memory_space<vmem>>, vector<8x32xf32>,
    return
  }
  func.func @transform_0(%arg0: i32) -> (i32, i32) {
    %c0_i32 = arith.constant 0 : i32
    %c0_i32_0 = arith.constant 0 : i32
    return %arg0, %c0_i32 : i32, i32
  }
  func.func @transform_1(%arg0: i32) -> (i32, i32) {
    %c0_i32 = arith.constant 0 : i32
    %c0_i32_0 = arith.constant 0 : i32
    return %arg0, %c0_i32 : i32, i32
  }
  func.func @transform_2(%arg0: i32) -> (i32, i32) {
    %c0_i32 = arith.constant 0 : i32
    %c0_i32_0 = arith.constant 0 : i32
    %c0_i32_1 = arith.constant 0 : i32
    return %c0_i32, %c0_i32_0 : i32, i32
  }
  func.func @transform_3(%arg0: i32) -> (i32, i32) {
    %c0_i32 = arith.constant 0 : i32
    %c0_i32_0 = arith.constant 0 : i32
    %c0_i32_1 = arith.constant 0 : i32
    return %c0_i32, %c0_i32_0 : i32, i32
  }
  func.func @transform_4(%arg0: i32) -> (i32, i32) {
    %c0_i32 = arith.constant 0 : i32
    %c0_i32_0 = arith.constant 0 : i32
    %c0_i32_1 = arith.constant 0 : i32
    return %c0_i32, %c0_i32_0 : i32, i32
  }
  func.func @transform_5(%arg0: i32) -> (i32, i32) {
    %c0_i32 = arith.constant 0 : i32
    %c0_i32_0 = arith.constant 0 : i32
    %c0_i32_1 = arith.constant 0 : i32
    return %c0_i32, %c0_i32_0 : i32, i32
  }
  func.func @transform_6(%arg0: i32) -> (i32, i32) {
    %c0_i32 = arith.constant 0 : i32
    %c0_i32_0 = arith.constant 0 : i32
    %c0_i32_1 = arith.constant 0 : i32
    return %c0_i32, %c0_i32_0 : i32, i32
  }
  func.func @transform_7(%arg0: i32) -> (i32, i32) {
    %c0_i32 = arith.constant 0 : i32
    %c0_i32_0 = arith.constant 0 : i32
    %c0_i32_1 = arith.constant 0 : i32
    return %c0_i32, %c0_i32_0 : i32, i32
  }
  func.func @transform_8(%arg0: i32) -> (i32, i32) {
    %c0_i32 = arith.constant 0 : i32
    %c0_i32_0 = arith.constant 0 : i32
    %c0_i32_1 = arith.constant 0 : i32
    return %c0_i32, %c0_i32_0 : i32, i32
  }
  func.func @transform_9(%arg0: i32) -> (i32, i32) {
    %c0_i32 = arith.constant 0 : i32
    %c0_i32_0 = arith.constant 0 : i32
    %c0_i32_1 = arith.constant 0 : i32
    return %c0_i32, %c0_i32_0 : i32, i32
  }
  func.func @transform_10(%arg0: i32) -> (i32, i32) {
    %c0_i32 = arith.constant 0 : i32
    %c0_i32_0 = arith.constant 0 : i32
    return %arg0, %c0_i32 : i32, i32
  }
  func.func @transform_11(%arg0: i32) -> (i32, i32) {
    %c0_i32 = arith.constant 0 : i32
    %c0_i32_0 = arith.constant 0 : i32
    return %arg0, %c0_i32 : i32, i32
  }
}

</mosaic_0001>

<llo_original>
// kernel: tpu_custom_call.1
$region0: #{tpu_custom_call.1}
  #allocation0 [shape = 'u32[]', space=smem, size = 0x4, offset = 0x4, fixed_abs, tag = 'smem constant byte address 0x4 - core index']
  #allocation1 [shape = 'u32[72,128]{1,0:T(1,128)}', space=vmem, size = 0x9000, scoped, tag = 'internal scratch']
  #allocation2 [shape = 'f32[8,32]{1,0:T(8,128)}', space=vmem, size = 0x1000, scoped, tag = 'scratch operand']
  %s0 = inlined_call_operand.hbm [shape: f32[16,32], index: 0, kind: input, shape index: {}]
  %s1 = inlined_call_operand.hbm [shape: f32[32,32], index: 1, kind: input, shape index: {}]
  %s2 = inlined_call_operand.hbm [shape: f32[32,32], index: 2, kind: input, shape index: {}]
  %s3 = inlined_call_operand.vmem [shape: f32[1,32], index: 3, kind: input, shape index: {}]
  %s4 = inlined_call_operand.hbm [shape: f32[32,32], index: 4, kind: input, shape index: {}]
  %s5 = inlined_call_operand.vmem [shape: f32[1,32], index: 5, kind: input, shape index: {}]
  %s6 = inlined_call_operand.hbm [shape: f32[32,32], index: 6, kind: input, shape index: {}]
  %s7 = inlined_call_operand.vmem [shape: f32[1,32], index: 7, kind: input, shape index: {}]
  %s8 = inlined_call_operand.hbm [shape: f32[32,32], index: 8, kind: input, shape index: {}]
  %s9 = inlined_call_operand.vmem [shape: f32[1,32], index: 9, kind: input, shape index: {}]
  %s10 = inlined_call_operand.hbm [shape: f32[16,32], index: 10, kind: output, shape index: {0}]
  %s11 = inlined_call_operand.hbm [shape: f32[16,16], index: 11, kind: output, shape index: {1}]
  %12 = xla_tuple %s10, %s11
  %s13 = sld [smem:[#allocation0]]
  $region105: #{tpu_custom_call.1} parent=0
    _
  %s15 = ssub.s32 1, %s13
  %s16 = scalar_select 0, %s15, %s13
  $region1: #{tpu_custom_call.1} parent=0
    #allocation3 [shape = 'u8[8192]{0}', space=vmem, size = 0x2000, scoped, tag = 'input window, operand 0']
    #allocation4 [shape = 's32[2]{0}', space=sflag, size = 0x8, scoped, tag = 'scoped memory for tpu_custom_call.1']
    #allocation5 [shape = 's32[2]{0}', space=sflag, size = 0x8, scoped, tag = 'scoped memory for tpu_custom_call.1']
    #allocation6 [shape = 'u8[16384]{0}', space=vmem, size = 0x4000, scoped, tag = 'input window, operand 1']
    #allocation7 [shape = 's32[2]{0}', space=sflag, size = 0x8, scoped, tag = 'scoped memory for tpu_custom_call.1']
    #allocation8 [shape = 'u8[16384]{0}', space=vmem, size = 0x4000, scoped, tag = 'input window, operand 2, single buffered']
    #allocation9 [shape = 'u8[16384]{0}', space=vmem, size = 0x4000, scoped, tag = 'input window, operand 4, single buffered']
    #allocation10 [shape = 's32[1]{0}', space=sflag, size = 0x4, scoped, tag = 'scoped memory for tpu_custom_call.1']
    #allocation11 [shape = 'u8[16384]{0}', space=vmem, size = 0x4000, scoped, tag = 'input window, operand 6, single buffered']
    #allocation12 [shape = 'u8[16384]{0}', space=vmem, size = 0x4000, scoped, tag = 'input window, operand 8, single buffered']
    #allocation13 [shape = 's32[1]{0}', space=sflag, size = 0x4, scoped, tag = 'scoped memory for tpu_custom_call.1']
    #allocation14 [shape = 'u8[8192]{0}', space=vmem, size = 0x2000, scoped, tag = 'output window, operand 0']
    #allocation15 [shape = 'u8[8192]{0}', space=vmem, size = 0x2000, scoped, tag = 'output window, operand 1']
    #allocation16 [shape = 's32[2]{0}', space=sflag, size = 0x8, scoped, tag = 'scoped memory for tpu_custom_call.1']
    %17 = vsyncpa [#allocation4], 0
    %s18 = scalar_lea.sflag [#allocation4], 1
    %19 = vsyncpa %s18, 0
    %20 = vsyncpa [#allocation7], 0
    %s21 = scalar_lea.sflag [#allocation7], 1
    %22 = vsyncpa %s21, 0
    %23 = vsyncpa [#allocation10], 0
    %24 = vsyncpa [#allocation13], 0
    %25 = vsyncpa [#allocation5], 0
    %s26 = scalar_lea.sflag [#allocation5], 1
    %27 = vsyncpa %s26, 0
    %28 = vsyncpa [#allocation16], 0
    %s29 = scalar_lea.sflag [#allocation16], 1
    %30 = vsyncpa %s29, 0
    loop: start=0, step=1, limit=4
    $region2: #{tpu_custom_call.1} parent=1 // loop_pre_header
      _
    $region3: #{tpu_custom_call.1} parent=1 // loop_header
      %s32 = sphi 0, %s36
      %p33 = scmp.ge.s32.totalorder %s32, 4
      %s42 = sphi 0, %s44
      %s45 = sphi 0, %s42
      %s46 = sphi 0, %s45
      %s62 = sphi 0, %s46
      %s68 = sphi 0, %s70
      %s71 = sphi 0, %s68
      %s72 = sphi 0, %s71
      %s88 = sphi 0, %s72
      %s92 = sphi 0, %s92
      %s94 = sphi 0, %s92
      %s95 = sphi 0, %s94
      %s109 = sphi 0, %s95
      %s113 = sphi 0, %s113
      %s115 = sphi 0, %s113
      %s116 = sphi 0, %s115
      %s130 = sphi 0, %s116
      %s134 = sphi 0, %s134
      %s136 = sphi 0, %s134
      %s137 = sphi 0, %s136
      %s151 = sphi 0, %s137
      %s155 = sphi 0, %s155
      %s157 = sphi 0, %s155
      %s158 = sphi 0, %s157
      %s172 = sphi 0, %s158
      %s176 = sphi 0, %s176
      %s178 = sphi 0, %s176
      %s179 = sphi 0, %s178
      %s193 = sphi 0, %s179
      %s197 = sphi 0, %s197
      %s199 = sphi 0, %s197
      %s200 = sphi 0, %s199
      %s214 = sphi 0, %s200
      %s218 = sphi 0, %s218
      %s220 = sphi 0, %s218
      %s221 = sphi 0, %s220
      %s235 = sphi 0, %s221
      %s239 = sphi 0, %s239
      %s241 = sphi 0, %s239
      %s242 = sphi 0, %s241
      %s256 = sphi 0, %s242
      %s262 = sphi 0, %s264
      %s265 = sphi 0, %s262
      %s266 = sphi 0, %s265
      %s282 = sphi 0, %s266
      %s288 = sphi 0, %s290
      %s291 = sphi 0, %s288
      %s292 = sphi 0, %s291
      %s308 = sphi 0, %s292
    $region4: #{tpu_custom_call.1} parent=1 // loop_header_branch
      %35 = sbr.rel (%p33) target = $region8
    $region5: #{tpu_custom_call.1} parent=1 // loop_body
      %s37 = ssub.s32 %s32, 1
      %s38 = ssub.s32 %s32, 2
      %s39 = sadd.s32 %s32, 1
      %s40 = ssub.s32 %s32, %s39
      %p41 = scmp.eq.s32.totalorder %s40, 0
      %s43 = sadd.s32 %s42, 1
      %s44 = scalar_select %p41, %s42, %s43
      %p47 = pneg %p41
      %p48 = scmp.eq.s32.totalorder %s32, 1
      %p49 = por %p47, %p48
      %p50 = scmp.ne.s32.totalorder %s42, %s45
      %p51 = scmp.eq.s32.totalorder %s32, 0
      %p52 = por %p50, %p51
      %p53 = scmp.ne.s32.totalorder %s42, %s45
      %p54 = scmp.eq.s32.totalorder %s37, 1
      %p55 = por %p53, %p54
      %p56 = scmp.ne.s32.totalorder %s45, %s46
      %p57 = scmp.eq.s32.totalorder %s37, 0
      %p58 = por %p56, %p57
      %p59 = scmp.ne.s32.totalorder %s45, %s46
      %p60 = scmp.eq.s32.totalorder %s38, 1
      %p61 = por %p59, %p60
      %p63 = scmp.ne.s32.totalorder %s46, %s62
      %p64 = scmp.eq.s32.totalorder %s38, 0
      %p65 = por %p63, %p64
      %s66 = ssub.s32 %s32, %s39
      %p67 = scmp.eq.s32.totalorder %s66, 0
      %s69 = sadd.s32 %s68, 1
      %s70 = scalar_select %p67, %s68, %s69
      %p73 = pneg %p67
      %p74 = scmp.eq.s32.totalorder %s32, 1
      %p75 = por %p73, %p74
      %p76 = scmp.ne.s32.totalorder %s68, %s71
      %p77 = scmp.eq.s32.totalorder %s32, 0
      %p78 = por %p76, %p77
      %p79 = scmp.ne.s32.totalorder %s68, %s71
      %p80 = scmp.eq.s32.totalorder %s37, 1
      %p81 = por %p79, %p80
      %p82 = scmp.ne.s32.totalorder %s71, %s72
      %p83 = scmp.eq.s32.totalorder %s37, 0
      %p84 = por %p82, %p83
      %p85 = scmp.ne.s32.totalorder %s71, %s72
      %p86 = scmp.eq.s32.totalorder %s38, 1
      %p87 = por %p85, %p86
      %p89 = scmp.ne.s32.totalorder %s72, %s88
      %p90 = scmp.eq.s32.totalorder %s38, 0
      %p91 = por %p89, %p90
      %s93 = sadd.s32 %s92, 1
      %p96 = scmp.eq.s32.totalorder %s32, 1
      %p97 = scmp.ne.s32.totalorder %s92, %s94
      %p98 = scmp.eq.s32.totalorder %s32, 0
      %p99 = por %p97, %p98
      %p100 = scmp.ne.s32.totalorder %s92, %s94
      %p101 = scmp.eq.s32.totalorder %s37, 1
      %p102 = por %p100, %p101
      %p103 = scmp.ne.s32.totalorder %s94, %s95
      %p104 = scmp.eq.s32.totalorder %s37, 0
      %p105 = por %p103, %p104
      %p106 = scmp.ne.s32.totalorder %s94, %s95
      %p107 = scmp.eq.s32.totalorder %s38, 1
      %p108 = por %p106, %p107
      %p110 = scmp.ne.s32.totalorder %s95, %s109
      %p111 = scmp.eq.s32.totalorder %s38, 0
      %p112 = por %p110, %p111
      %s114 = sadd.s32 %s113, 1
      %p117 = scmp.eq.s32.totalorder %s32, 1
      %p118 = scmp.ne.s32.totalorder %s113, %s115
      %p119 = scmp.eq.s32.totalorder %s32, 0
      %p120 = por %p118, %p119
      %p121 = scmp.ne.s32.totalorder %s113, %s115
      %p122 = scmp.eq.s32.totalorder %s37, 1
      %p123 = por %p121, %p122
      %p124 = scmp.ne.s32.totalorder %s115, %s116
      %p125 = scmp.eq.s32.totalorder %s37, 0
      %p126 = por %p124, %p125
      %p127 = scmp.ne.s32.totalorder %s115, %s116
      %p128 = scmp.eq.s32.totalorder %s38, 1
      %p129 = por %p127, %p128
      %p131 = scmp.ne.s32.totalorder %s116, %s130
      %p132 = scmp.eq.s32.totalorder %s38, 0
      %p133 = por %p131, %p132
      %s135 = sadd.s32 %s134, 1
      %p138 = scmp.eq.s32.totalorder %s32, 1
      %p139 = scmp.ne.s32.totalorder %s134, %s136
      %p140 = scmp.eq.s32.totalorder %s32, 0
      %p141 = por %p139, %p140
      %p142 = scmp.ne.s32.totalorder %s134, %s136
      %p143 = scmp.eq.s32.totalorder %s37, 1
      %p144 = por %p142, %p143
      %p145 = scmp.ne.s32.totalorder %s136, %s137
      %p146 = scmp.eq.s32.totalorder %s37, 0
      %p147 = por %p145, %p146
      %p148 = scmp.ne.s32.totalorder %s136, %s137
      %p149 = scmp.eq.s32.totalorder %s38, 1
      %p150 = por %p148, %p149
      %p152 = scmp.ne.s32.totalorder %s137, %s151
      %p153 = scmp.eq.s32.totalorder %s38, 0
      %p154 = por %p152, %p153
      %s156 = sadd.s32 %s155, 1
      %p159 = scmp.eq.s32.totalorder %s32, 1
      %p160 = scmp.ne.s32.totalorder %s155, %s157
      %p161 = scmp.eq.s32.totalorder %s32, 0
      %p162 = por %p160, %p161
      %p163 = scmp.ne.s32.totalorder %s155, %s157
      %p164 = scmp.eq.s32.totalorder %s37, 1
      %p165 = por %p163, %p164
      %p166 = scmp.ne.s32.totalorder %s157, %s158
      %p167 = scmp.eq.s32.totalorder %s37, 0
      %p168 = por %p166, %p167
      %p169 = scmp.ne.s32.totalorder %s157, %s158
      %p170 = scmp.eq.s32.totalorder %s38, 1
      %p171 = por %p169, %p170
      %p173 = scmp.ne.s32.totalorder %s158, %s172
      %p174 = scmp.eq.s32.totalorder %s38, 0
      %p175 = por %p173, %p174
      %s177 = sadd.s32 %s176, 1
      %p180 = scmp.eq.s32.totalorder %s32, 1
      %p181 = scmp.ne.s32.totalorder %s176, %s178
      %p182 = scmp.eq.s32.totalorder %s32, 0
      %p183 = por %p181, %p182
      %p184 = scmp.ne.s32.totalorder %s176, %s178
      %p185 = scmp.eq.s32.totalorder %s37, 1
      %p186 = por %p184, %p185
      %p187 = scmp.ne.s32.totalorder %s178, %s179
      %p188 = scmp.eq.s32.totalorder %s37, 0
      %p189 = por %p187, %p188
      %p190 = scmp.ne.s32.totalorder %s178, %s179
      %p191 = scmp.eq.s32.totalorder %s38, 1
      %p192 = por %p190, %p191
      %p194 = scmp.ne.s32.totalorder %s179, %s193
      %p195 = scmp.eq.s32.totalorder %s38, 0
      %p196 = por %p194, %p195
      %s198 = sadd.s32 %s197, 1
      %p201 = scmp.eq.s32.totalorder %s32, 1
      %p202 = scmp.ne.s32.totalorder %s197, %s199
      %p203 = scmp.eq.s32.totalorder %s32, 0
      %p204 = por %p202, %p203
      %p205 = scmp.ne.s32.totalorder %s197, %s199
      %p206 = scmp.eq.s32.totalorder %s37, 1
      %p207 = por %p205, %p206
      %p208 = scmp.ne.s32.totalorder %s199, %s200
      %p209 = scmp.eq.s32.totalorder %s37, 0
      %p210 = por %p208, %p209
      %p211 = scmp.ne.s32.totalorder %s199, %s200
      %p212 = scmp.eq.s32.totalorder %s38, 1
      %p213 = por %p211, %p212
      %p215 = scmp.ne.s32.totalorder %s200, %s214
      %p216 = scmp.eq.s32.totalorder %s38, 0
      %p217 = por %p215, %p216
      %s219 = sadd.s32 %s218, 1
      %p222 = scmp.eq.s32.totalorder %s32, 1
      %p223 = scmp.ne.s32.totalorder %s218, %s220
      %p224 = scmp.eq.s32.totalorder %s32, 0
      %p225 = por %p223, %p224
      %p226 = scmp.ne.s32.totalorder %s218, %s220
      %p227 = scmp.eq.s32.totalorder %s37, 1
      %p228 = por %p226, %p227
      %p229 = scmp.ne.s32.totalorder %s220, %s221
      %p230 = scmp.eq.s32.totalorder %s37, 0
      %p231 = por %p229, %p230
      %p232 = scmp.ne.s32.totalorder %s220, %s221
      %p233 = scmp.eq.s32.totalorder %s38, 1
      %p234 = por %p232, %p233
      %p236 = scmp.ne.s32.totalorder %s221, %s235
      %p237 = scmp.eq.s32.totalorder %s38, 0
      %p238 = por %p236, %p237
      %s240 = sadd.s32 %s239, 1
      %p243 = scmp.eq.s32.totalorder %s32, 1
      %p244 = scmp.ne.s32.totalorder %s239, %s241
      %p245 = scmp.eq.s32.totalorder %s32, 0
      %p246 = por %p244, %p245
      %p247 = scmp.ne.s32.totalorder %s239, %s241
      %p248 = scmp.eq.s32.totalorder %s37, 1
      %p249 = por %p247, %p248
      %p250 = scmp.ne.s32.totalorder %s241, %s242
      %p251 = scmp.eq.s32.totalorder %s37, 0
      %p252 = por %p250, %p251
      %p253 = scmp.ne.s32.totalorder %s241, %s242
      %p254 = scmp.eq.s32.totalorder %s38, 1
      %p255 = por %p253, %p254
      %p257 = scmp.ne.s32.totalorder %s242, %s256
      %p258 = scmp.eq.s32.totalorder %s38, 0
      %p259 = por %p257, %p258
      %s260 = ssub.s32 %s32, %s39
      %p261 = scmp.eq.s32.totalorder %s260, 0
      %s263 = sadd.s32 %s262, 1
      %s264 = scalar_select %p261, %s262, %s263
      %p267 = pneg %p261
      %p268 = scmp.eq.s32.totalorder %s32, 1
      %p269 = por %p267, %p268
      %p270 = scmp.ne.s32.totalorder %s262, %s265
      %p271 = scmp.eq.s32.totalorder %s32, 0
      %p272 = por %p270, %p271
      %p273 = scmp.ne.s32.totalorder %s262, %s265
      %p274 = scmp.eq.s32.totalorder %s37, 1
      %p275 = por %p273, %p274
      %p276 = scmp.ne.s32.totalorder %s265, %s266
      %p277 = scmp.eq.s32.totalorder %s37, 0
      %p278 = por %p276, %p277
      %p279 = scmp.ne.s32.totalorder %s265, %s266
      %p280 = scmp.eq.s32.totalorder %s38, 1
      %p281 = por %p279, %p280
      %p283 = scmp.ne.s32.totalorder %s266, %s282
      %p284 = scmp.eq.s32.totalorder %s38, 0
      %p285 = por %p283, %p284
      %s286 = ssub.s32 %s32, %s39
      %p287 = scmp.eq.s32.totalorder %s286, 0
      %s289 = sadd.s32 %s288, 1
      %s290 = scalar_select %p287, %s288, %s289
      %p293 = pneg %p287
      %p294 = scmp.eq.s32.totalorder %s32, 1
      %p295 = por %p293, %p294
      %p296 = scmp.ne.s32.totalorder %s288, %s291
      %p297 = scmp.eq.s32.totalorder %s32, 0
      %p298 = por %p296, %p297
      %p299 = scmp.ne.s32.totalorder %s288, %s291
      %p300 = scmp.eq.s32.totalorder %s37, 1
      %p301 = por %p299, %p300
      %p302 = scmp.ne.s32.totalorder %s291, %s292
      %p303 = scmp.eq.s32.totalorder %s37, 0
      %p304 = por %p302, %p303
      %p305 = scmp.ne.s32.totalorder %s291, %s292
      %p306 = scmp.eq.s32.totalorder %s38, 1
      %p307 = por %p305, %p306
      %p309 = scmp.ne.s32.totalorder %s292, %s308
      %p310 = scmp.eq.s32.totalorder %s38, 0
      %p311 = por %p309, %p310
      %p312 = scmp.le.s32.totalorder 1, %s32
      %p313 = scmp.lt.s32.totalorder %s32, 3
      %p314 = pnand %p312, %p313
      %p315 = pneg %p314
      // Predicated region
      $region9: #{tpu_custom_call.1} parent=5 // pred_check
        _
      $region10: #{tpu_custom_call.1} parent=5 // pred_check_branch
        %317 = sbr.rel (%p314) target = $region12
      $region11: #{tpu_custom_call.1} parent=5 // pred_region
        %s318 = ssub.s32 %s32, 1
        // Predicated region
        $region13: #{tpu_custom_call.1} parent=11 // pred_check
          %p319 = pneg %p105
        $region14: #{tpu_custom_call.1} parent=11 // pred_check_branch
          %321 = sbr.rel (%p319) target = $region16
        $region15: #{tpu_custom_call.1} parent=11 // pred_region
          %323 = vsyncadd [#allocation7], 0
          %s324 = sshll.u32 %s2, 4
          %s325 = int_to_ptr.hbm [resolvable:$true] %s324
          %s326 = sshll.u32 [#allocation8], 4
          %s327 = int_to_ptr.vmem [resolvable:$true] %s326
          %332 = dma.hbm_to_vmem [thread:$0]  %s325, 512, %s327, [#allocation7], 128, 128, 8
        $region16: #{tpu_custom_call.1} parent=11 // pred_fallthru
          _
        // Predicated region
        $region17: #{tpu_custom_call.1} parent=11 // pred_check
          %p333 = pneg %p126
        $region18: #{tpu_custom_call.1} parent=11 // pred_check_branch
          %335 = sbr.rel (%p333) target = $region20
        $region19: #{tpu_custom_call.1} parent=11 // pred_region
          _
        $region20: #{tpu_custom_call.1} parent=11 // pred_fallthru
          _
        // Predicated region
        $region21: #{tpu_custom_call.1} parent=11 // pred_check
          %p336 = pneg %p147
        $region22: #{tpu_custom_call.1} parent=11 // pred_check_branch
          %338 = sbr.rel (%p336) target = $region24
        $region23: #{tpu_custom_call.1} parent=11 // pred_region
          %340 = vsyncadd [#allocation10], 0
          %s341 = sshll.u32 %s4, 4
          %s342 = int_to_ptr.hbm [resolvable:$true] %s341
          %s343 = sshll.u32 [#allocation9], 4
          %s344 = int_to_ptr.vmem [resolvable:$true] %s343
          %349 = dma.hbm_to_vmem [thread:$0]  %s342, 512, %s344, [#allocation10], 128, 128, 8
        $region24: #{tpu_custom_call.1} parent=11 // pred_fallthru
          _
        // Predicated region
        $region25: #{tpu_custom_call.1} parent=11 // pred_check
          %p350 = pneg %p168
        $region26: #{tpu_custom_call.1} parent=11 // pred_check_branch
          %352 = sbr.rel (%p350) target = $region28
        $region27: #{tpu_custom_call.1} parent=11 // pred_region
          _
        $region28: #{tpu_custom_call.1} parent=11 // pred_fallthru
          _
        // Predicated region
        $region29: #{tpu_custom_call.1} parent=11 // pred_check
          %p353 = pneg %p189
        $region30: #{tpu_custom_call.1} parent=11 // pred_check_branch
          %355 = sbr.rel (%p353) target = $region32
        $region31: #{tpu_custom_call.1} parent=11 // pred_region
          %357 = vsyncadd [#allocation10], 0
          %s358 = sshll.u32 %s6, 4
          %s359 = int_to_ptr.hbm [resolvable:$true] %s358
          %s360 = sshll.u32 [#allocation11], 4
          %s361 = int_to_ptr.vmem [resolvable:$true] %s360
          %366 = dma.hbm_to_vmem [thread:$0]  %s359, 512, %s361, [#allocation10], 128, 128, 8
        $region32: #{tpu_custom_call.1} parent=11 // pred_fallthru
          _
        // Predicated region
        $region33: #{tpu_custom_call.1} parent=11 // pred_check
          %p367 = pneg %p210
        $region34: #{tpu_custom_call.1} parent=11 // pred_check_branch
          %369 = sbr.rel (%p367) target = $region36
        $region35: #{tpu_custom_call.1} parent=11 // pred_region
          _
        $region36: #{tpu_custom_call.1} parent=11 // pred_fallthru
          _
        // Predicated region
        $region37: #{tpu_custom_call.1} parent=11 // pred_check
          %p370 = pneg %p231
        $region38: #{tpu_custom_call.1} parent=11 // pred_check_branch
          %372 = sbr.rel (%p370) target = $region40
        $region39: #{tpu_custom_call.1} parent=11 // pred_region
          %374 = vsyncadd [#allocation13], 0
          %s375 = sshll.u32 %s8, 4
          %s376 = int_to_ptr.hbm [resolvable:$true] %s375
          %s377 = sshll.u32 [#allocation12], 4
          %s378 = int_to_ptr.vmem [resolvable:$true] %s377
          %383 = dma.hbm_to_vmem [thread:$0]  %s376, 512, %s378, [#allocation13], 128, 128, 8
        $region40: #{tpu_custom_call.1} parent=11 // pred_fallthru
          _
        // Predicated region
        $region41: #{tpu_custom_call.1} parent=11 // pred_check
          %p384 = pneg %p252
        $region42: #{tpu_custom_call.1} parent=11 // pred_check_branch
          %386 = sbr.rel (%p384) target = $region44
        $region43: #{tpu_custom_call.1} parent=11 // pred_region
          _
        $region44: #{tpu_custom_call.1} parent=11 // pred_fallthru
          _
      $region12: #{tpu_custom_call.1} parent=5 // pred_fallthru
        _
      %p387 = scmp.lt.s32.totalorder %s32, 2
      // Predicated region
      $region45: #{tpu_custom_call.1} parent=5 // pred_check
        %p388 = pneg %p387
      $region46: #{tpu_custom_call.1} parent=5 // pred_check_branch
        %390 = sbr.rel (%p388) target = $region48
      $region47: #{tpu_custom_call.1} parent=5 // pred_region
        // Predicated region
        $region49: #{tpu_custom_call.1} parent=47 // pred_check
          %p391 = pneg %p52
        $region50: #{tpu_custom_call.1} parent=47 // pred_check_branch
          %393 = sbr.rel (%p391) target = $region52
        $region51: #{tpu_custom_call.1} parent=47 // pred_region
          %s394 = sand.u32 %s42, 1
          %s395 = scalar_lea.sflag [#allocation4], %s394
          %s396 = sand.u32 %s42, 1
          %s397 = smul.addr %s396, 8
          %s398 = scalar_lea.vmem [#allocation3], %s397
          %400 = vsyncadd %s395, 0
          %s401 = smul.addr %s32, 8
          %s402 = scalar_lea.hbm %s0, %s401
          %s404 = sshll.u32 %s402, 4
          %s405 = int_to_ptr.hbm [resolvable:$true] %s404
          %s406 = sshll.u32 %s398, 4
          %s407 = int_to_ptr.vmem [resolvable:$true] %s406
          %409 = dma.hbm_to_vmem [thread:$0]  %s405, 128, %s407, %s395
        $region52: #{tpu_custom_call.1} parent=47 // pred_fallthru
          _
        // Predicated region
        $region53: #{tpu_custom_call.1} parent=47 // pred_check
          %p410 = pneg %p78
        $region54: #{tpu_custom_call.1} parent=47 // pred_check_branch
          %412 = sbr.rel (%p410) target = $region56
        $region55: #{tpu_custom_call.1} parent=47 // pred_region
          %s413 = sand.u32 %s32, 1
          %s414 = scalar_lea.sflag [#allocation7], %s413
          %s415 = sand.u32 %s68, 1
          %s416 = smul.addr %s415, 16
          %s417 = scalar_lea.vmem [#allocation6], %s416
          %s418 = smul.u32 2, %s32
          %420 = vsyncadd %s414, 0
          %s421 = smul.addr %s418, 8
          %s422 = scalar_lea.hbm %s1, %s421
          %s423 = sshll.u32 %s422, 4
          %s424 = int_to_ptr.hbm [resolvable:$true] %s423
          %s425 = sshll.u32 %s417, 4
          %s426 = int_to_ptr.vmem [resolvable:$true] %s425
          %431 = dma.hbm_to_vmem [thread:$0]  %s424, 256, %s426, %s414, 128, 128, 8
        $region56: #{tpu_custom_call.1} parent=47 // pred_fallthru
          _
      $region48: #{tpu_custom_call.1} parent=5 // pred_fallthru
        _
      %p432 = scmp.le.s32.totalorder 1, %s32
      %p433 = scmp.lt.s32.totalorder %s32, 3
      %p434 = pnand %p432, %p433
      %p435 = pneg %p434
      // Predicated region
      $region57: #{tpu_custom_call.1} parent=5 // pred_check
        _
      $region58: #{tpu_custom_call.1} parent=5 // pred_check_branch
        %437 = sbr.rel (%p434) target = $region60
      $region59: #{tpu_custom_call.1} parent=5 // pred_region
        %s438 = ssub.s32 %s32, 1
        %s439 = sand.u32 %s45, 1
        %s440 = scalar_lea.sflag [#allocation4], %s439
        %s441 = sand.u32 %s45, 1
        %s442 = smul.addr %s441, 8
        %s443 = scalar_lea.vmem [#allocation3], %s442
        // Predicated region
        $region61: #{tpu_custom_call.1} parent=59 // pred_check
          %p444 = pneg %p58
        $region62: #{tpu_custom_call.1} parent=59 // pred_check_branch
          %446 = sbr.rel (%p444) target = $region64
        $region63: #{tpu_custom_call.1} parent=59 // pred_region
          %448 = dma.done %s440, 128
        $region64: #{tpu_custom_call.1} parent=59 // pred_fallthru
          _
        %s449 = sand.u32 %s37, 1
        %s450 = scalar_lea.sflag [#allocation7], %s449
        %s451 = sand.u32 %s71, 1
        %s452 = smul.addr %s451, 16
        %s453 = scalar_lea.vmem [#allocation6], %s452
        // Predicated region
        $region65: #{tpu_custom_call.1} parent=59 // pred_check
          %p454 = pneg %p84
        $region66: #{tpu_custom_call.1} parent=59 // pred_check_branch
          %456 = sbr.rel (%p454) target = $region68
        $region67: #{tpu_custom_call.1} parent=59 // pred_region
          %458 = dma.done %s450, 256
        $region68: #{tpu_custom_call.1} parent=59 // pred_fallthru
          _
        // Predicated region
        $region69: #{tpu_custom_call.1} parent=59 // pred_check
          %p459 = pneg %p105
        $region70: #{tpu_custom_call.1} parent=59 // pred_check_branch
          %461 = sbr.rel (%p459) target = $region72
        $region71: #{tpu_custom_call.1} parent=59 // pred_region
          %463 = dma.done [#allocation7], 512
        $region72: #{tpu_custom_call.1} parent=59 // pred_fallthru
          _
        // Predicated region
        $region73: #{tpu_custom_call.1} parent=59 // pred_check
          %p464 = pneg %p147
        $region74: #{tpu_custom_call.1} parent=59 // pred_check_branch
          %466 = sbr.rel (%p464) target = $region76
        $region75: #{tpu_custom_call.1} parent=59 // pred_region
          %468 = dma.done [#allocation10], 512
        $region76: #{tpu_custom_call.1} parent=59 // pred_fallthru
          _
        // Predicated region
        $region77: #{tpu_custom_call.1} parent=59 // pred_check
          %p469 = pneg %p189
        $region78: #{tpu_custom_call.1} parent=59 // pred_check_branch
          %471 = sbr.rel (%p469) target = $region80
        $region79: #{tpu_custom_call.1} parent=59 // pred_region
          %473 = dma.done [#allocation10], 512
        $region80: #{tpu_custom_call.1} parent=59 // pred_fallthru
          _
        // Predicated region
        $region81: #{tpu_custom_call.1} parent=59 // pred_check
          %p474 = pneg %p231
        $region82: #{tpu_custom_call.1} parent=59 // pred_check_branch
          %476 = sbr.rel (%p474) target = $region84
        $region83: #{tpu_custom_call.1} parent=59 // pred_region
          %478 = dma.done [#allocation13], 512
        $region84: #{tpu_custom_call.1} parent=59 // pred_fallthru
          _
        %s479 = sand.u32 %s45, 1
        %s480 = scalar_lea.sflag [#allocation4], %s479
        %s481 = sand.u32 %s45, 1
        %s482 = smul.addr %s481, 8
        %s483 = scalar_lea.vmem [#allocation3], %s482
        %p484 = pneg %p58
        %p485 = pneg %p55
        %s486 = sand.u32 %s37, 1
        %s487 = scalar_lea.sflag [#allocation7], %s486
        %s488 = sand.u32 %s71, 1
        %s489 = smul.addr %s488, 16
        %s490 = scalar_lea.vmem [#allocation6], %s489
        %p491 = pneg %p84
        %p492 = pneg %p81
        %p493 = pneg %p105
        %p494 = pneg %p102
        %p495 = pneg %p126
        %p496 = pneg %p123
        %p497 = pneg %p147
        %p498 = pneg %p144
        %p499 = pneg %p168
        %p500 = pneg %p165
        %p501 = pneg %p189
        %p502 = pneg %p186
        %p503 = pneg %p210
        %p504 = pneg %p207
        %p505 = pneg %p231
        %p506 = pneg %p228
        %p507 = pneg %p252
        %p508 = pneg %p249
        %p509 = pneg %p278
        %p510 = pneg %p275
        %s511 = sand.u32 %s265, 1
        %s512 = scalar_lea.sflag [#allocation5], %s511
        %s513 = sand.u32 %s265, 1
        %s514 = smul.addr %s513, 8
        %s515 = scalar_lea.vmem [#allocation14], %s514
        %p516 = pneg %p304
        %p517 = pneg %p301
        %s518 = sand.u32 %s291, 1
        %s519 = scalar_lea.sflag [#allocation16], %s518
        %s520 = sand.u32 %s291, 1
        %s521 = smul.addr %s520, 8
        %s522 = scalar_lea.vmem [#allocation15], %s521
        %s523 = smul.u32 2, %s37
        %v524 = vld [vmem:[%s443] sm:$0xff]
        %v525 = vld [vmem:[%s453] sm:$0xff]
        %v526 = vld [vmem:[%s453 + $0x8] sm:$0xff]
        %v527 = vld [vmem:[#allocation8] sm:$0xff]
        %v528 = vld [vmem:[#allocation8 + $0x8] sm:$0xff]
        %v529 = vld [vmem:[#allocation8 + $0x10] sm:$0xff]
        %v530 = vld [vmem:[#allocation8 + $0x18] sm:$0xff]
        %v531 = vld [vmem:[%s3] sm:$0x1]
        %v533 = vperm.slane %v531, 0
        %vm535 = vcmask 261120
        %v537 = vsel %vm535, %v524, 0
        %539 = vmatpush.msra.mxu0 0.0
        %540 = vmatpush.msra.mxu0 0.0
        %541 = vmatpush.msra.mxu0 0.0
        %542 = vmatpush.msra.mxu0 0.0
        %543 = vmatpush.msra.mxu0 0.0
        %544 = vmatpush.msra.mxu0 0.0
        %545 = vmatpush.msra.mxu0 0.0
        %546 = vmatpush.msra.mxu0 0.0
        %547 = vmatpush.msra.mxu0 0.0
        %548 = vmatpush.msra.mxu0 0.0
        %549 = vmatpush.msra.mxu0 0.0
        %550 = vmatpush.msra.mxu0 0.0
        %551 = vmatpush.msra.mxu0 %v530
        %552 = vmatpush.msra.mxu0 %v529
        %553 = vmatpush.msra.mxu0 %v528
        %554 = vmatpush.msra.mxu0 %v527
        %555 = vmatmul.f32.gmra.mxu0 %v537
        %v556 = vpop.f32.mrf.mxu0
        %v557 = vadd.f32 %v533, %v556
        %558 = vdwg.mxu0
        %v559 = vld [vmem:[#allocation9] sm:$0xff]
        %v560 = vld [vmem:[#allocation9 + $0x8] sm:$0xff]
        %v561 = vld [vmem:[#allocation9 + $0x10] sm:$0xff]
        %v562 = vld [vmem:[#allocation9 + $0x18] sm:$0xff]
        %v563 = vld [vmem:[%s5] sm:$0x1]
        %v565 = vperm.slane %v563, 0
        %v568 = vsel %vm535, %v525, 0
        %v571 = vsel %vm535, %v526, 0
        %573 = vmatpush.msra.mxu0 0.0
        %574 = vmatpush.msra.mxu0 0.0
        %575 = vmatpush.msra.mxu0 0.0
        %576 = vmatpush.msra.mxu0 0.0
        %577 = vmatpush.msra.mxu0 0.0
        %578 = vmatpush.msra.mxu0 0.0
        %579 = vmatpush.msra.mxu0 0.0
        %580 = vmatpush.msra.mxu0 0.0
        %581 = vmatpush.msra.mxu0 0.0
        %582 = vmatpush.msra.mxu0 0.0
        %583 = vmatpush.msra.mxu0 0.0
        %584 = vmatpush.msra.mxu0 0.0
        %585 = vmatpush.msra.mxu0 %v562
        %586 = vmatpush.msra.mxu0 %v561
        %587 = vmatpush.msra.mxu0 %v560
        %588 = vmatpush.msra.mxu0 %v559
        %589 = vmatmul.f32.gmra.mxu0 %v568
        %v590 = vpop.f32.mrf.mxu0
        %v591 = vadd.f32 %v565, %v590
        %592 = vmatmul.f32.gmra.mxu0 %v571
        %v593 = vpop.f32.mrf.mxu0
        %v594 = vadd.f32 %v565, %v593
        %595 = vdwg.mxu0
        %v596 = vld [vmem:[#allocation11] sm:$0xff]
        %v597 = vld [vmem:[#allocation11 + $0x8] sm:$0xff]
        %v598 = vld [vmem:[#allocation11 + $0x10] sm:$0xff]
        %v599 = vld [vmem:[#allocation11 + $0x18] sm:$0xff]
        %v600 = vld [vmem:[%s7] sm:$0x1]
        %v602 = vperm.slane %v600, 0
        %604 = vmatpush.msra.mxu0 0.0
        %605 = vmatpush.msra.mxu0 0.0
        %606 = vmatpush.msra.mxu0 0.0
        %607 = vmatpush.msra.mxu0 0.0
        %608 = vmatpush.msra.mxu0 0.0
        %609 = vmatpush.msra.mxu0 0.0
        %610 = vmatpush.msra.mxu0 0.0
        %611 = vmatpush.msra.mxu0 0.0
        %612 = vmatpush.msra.mxu0 0.0
        %613 = vmatpush.msra.mxu0 0.0
        %614 = vmatpush.msra.mxu0 0.0
        %615 = vmatpush.msra.mxu0 0.0
        %616 = vmatpush.msra.mxu0 %v599
        %617 = vmatpush.msra.mxu0 %v598
        %618 = vmatpush.msra.mxu0 %v597
        %619 = vmatpush.msra.mxu0 %v596
        %620 = vmatmul.f32.gmra.mxu0 %v568
        %v621 = vpop.f32.mrf.mxu0
        %v622 = vadd.f32 %v602, %v621
        %623 = vmatmul.f32.gmra.mxu0 %v571
        %v624 = vpop.f32.mrf.mxu0
        %v625 = vadd.f32 %v602, %v624
        %626 = vdwg.mxu0
        %vm627 = vcmask 64512
        %v629 = vsel %vm627, %v557, 0
        %v632 = vsel %vm627, %v591, 0
        %v635 = vsel %vm627, %v594, 0
        %637 = vmatpush.xpose.msra.mxu0 0.0
        %638 = vmatpush.xpose.msra.mxu0 0.0
        %639 = vmatpush.xpose.msra.mxu0 0.0
        %640 = vmatpush.xpose.msra.mxu0 0.0
        %641 = vmatpush.xpose.msra.mxu0 0.0
        %642 = vmatpush.xpose.msra.mxu0 0.0
        %643 = vmatpush.xpose.msra.mxu0 0.0
        %644 = vmatpush.xpose.msra.mxu0 0.0
        %645 = vmatpush.xpose.msra.mxu0 0.0
        %646 = vmatpush.xpose.msra.mxu0 0.0
        %647 = vmatpush.xpose.msra.mxu0 0.0
        %648 = vmatpush.xpose.msra.mxu0 0.0
        %649 = vmatpush.xpose.msra.mxu0 0.0
        %650 = vmatpush.xpose.msra.mxu0 0.0
        %651 = vmatpush.xpose.msra.mxu0 %v635
        %652 = vmatpush.xpose.msra.mxu0 %v632
        %653 = vmatmul.f32.gmra.mxu0 %v629
        %v654 = vpop.f32.mrf.mxu0
        %v655 = vadd.f32 0.0, %v654
        %656 = vdwg.mxu0
        %vm657 = vcmask 130048
        %v658 = vsel %vm657, %v655, -inf
        %659 = vmax.xlane.f32.xlu0 %v658
        %v660 = vpop.xlane.xlu0 %659
        %v661 = vsub.f32 %v655, %v660
        %v662 = vmul.f32 %v661, 1.442695
        %v663 = vpow.pop %v662
        %v664 = vsel %vm657, %v663, 0.0
        %665 = vadd.xlane.f32.xlu0 %v664
        %v666 = vpop.xlane.xlu0 %665
        %v667 = vrcp.pop %v666
        %v668 = vmul.f32 %v663, %v667
        %v669 = vmul.f32 %v668, 0.25
        %670 = vst.msk [vmem:[%s522] sm:$0xff] %vm657, %v669
        %v672 = vsel %vm657, %v668, 0
        %674 = vmatpush.msra.mxu0 0.0
        %675 = vmatpush.msra.mxu0 0.0
        %676 = vmatpush.msra.mxu0 0.0
        %677 = vmatpush.msra.mxu0 0.0
        %678 = vmatpush.msra.mxu0 0.0
        %679 = vmatpush.msra.mxu0 0.0
        %680 = vmatpush.msra.mxu0 0.0
        %681 = vmatpush.msra.mxu0 0.0
        %682 = vmatpush.msra.mxu0 0.0
        %683 = vmatpush.msra.mxu0 0.0
        %684 = vmatpush.msra.mxu0 0.0
        %685 = vmatpush.msra.mxu0 0.0
        %686 = vmatpush.msra.mxu0 0.0
        %687 = vmatpush.msra.mxu0 0.0
        %688 = vmatpush.msra.mxu0 %v625
        %689 = vmatpush.msra.mxu0 %v622
        %690 = vmatmul.f32.gmra.mxu0 %v672
        %v691 = vpop.f32.mrf.mxu0
        %v692 = vadd.f32 0.0, %v691
        %693 = vdwg.mxu0
        %694 = vst.msk [vmem:[#allocation2] sm:$0xff] %vm627, %v692
        %695 = vrot.lane.b32.xlu0 %v557, 120
        %v696 = vpop.permute.xlu0 %695
        %697 = vrot.lane.b32.xlu0 %v591, 120
        %v698 = vpop.permute.xlu0 %697
        %699 = vrot.lane.b32.xlu0 %v594, 120
        %v700 = vpop.permute.xlu0 %699
        %v701 = vsel %vm627, %v696, 0
        %v703 = vsel %vm627, %v698, 0
        %v705 = vsel %vm627, %v700, 0
        %707 = vmatpush.xpose.msra.mxu0 0.0
        %708 = vmatpush.xpose.msra.mxu0 0.0
        %709 = vmatpush.xpose.msra.mxu0 0.0
        %710 = vmatpush.xpose.msra.mxu0 0.0
        %711 = vmatpush.xpose.msra.mxu0 0.0
        %712 = vmatpush.xpose.msra.mxu0 0.0
        %713 = vmatpush.xpose.msra.mxu0 0.0
        %714 = vmatpush.xpose.msra.mxu0 0.0
        %715 = vmatpush.xpose.msra.mxu0 0.0
        %716 = vmatpush.xpose.msra.mxu0 0.0
        %717 = vmatpush.xpose.msra.mxu0 0.0
        %718 = vmatpush.xpose.msra.mxu0 0.0
        %719 = vmatpush.xpose.msra.mxu0 0.0
        %720 = vmatpush.xpose.msra.mxu0 0.0
        %721 = vmatpush.xpose.msra.mxu0 %v705
        %722 = vmatpush.xpose.msra.mxu0 %v703
        %723 = vmatmul.f32.gmra.mxu0 %v701
        %v724 = vpop.f32.mrf.mxu0
        %v725 = vadd.f32 0.0, %v724
        %726 = vdwg.mxu0
        %v727 = vsel %vm657, %v725, -inf
        %728 = vmax.xlane.f32.xlu0 %v727
        %v729 = vpop.xlane.xlu0 %728
        %v730 = vsub.f32 %v725, %v729
        %v731 = vmul.f32 %v730, 1.442695
        %v732 = vpow.pop %v731
        %v733 = vsel %vm657, %v732, 0.0
        %734 = vadd.xlane.f32.xlu0 %v733
        %v735 = vpop.xlane.xlu0 %734
        %v736 = vrcp.pop %v735
        %v737 = vmul.f32 %v732, %v736
        %v738 = vmul.f32 %v737, 0.25
        %v739 = vld [vmem:[%s522] sm:$0xff]
        %v740 = vadd.f32 %v739, %v738
        %741 = vst.msk [vmem:[%s522] sm:$0xff] %vm657, %v740
        %744 = vrot.lane.b32.xlu0 %v622, 120
        %v745 = vpop.permute.xlu0 %744
        %746 = vrot.lane.b32.xlu0 %v625, 120
        %v747 = vpop.permute.xlu0 %746
        %v751 = vsel %vm657, %v737, 0
        %753 = vmatpush.msra.mxu0 0.0
        %754 = vmatpush.msra.mxu0 0.0
        %755 = vmatpush.msra.mxu0 0.0
        %756 = vmatpush.msra.mxu0 0.0
        %757 = vmatpush.msra.mxu0 0.0
        %758 = vmatpush.msra.mxu0 0.0
        %759 = vmatpush.msra.mxu0 0.0
        %760 = vmatpush.msra.mxu0 0.0
        %761 = vmatpush.msra.mxu0 0.0
        %762 = vmatpush.msra.mxu0 0.0
        %763 = vmatpush.msra.mxu0 0.0
        %764 = vmatpush.msra.mxu0 0.0
        %765 = vmatpush.msra.mxu0 0.0
        %766 = vmatpush.msra.mxu0 0.0
        %767 = vmatpush.msra.mxu0 %v747
        %768 = vmatpush.msra.mxu0 %v745
        %769 = vmatmul.f32.gmra.mxu0 %v751
        %v770 = vpop.f32.mrf.mxu0
        %v771 = vadd.f32 0.0, %v770
        %772 = vdwg.mxu0
        %774 = vrot.lane.b32.xlu0 %v771, 8
        %v775 = vpop.permute.xlu0 %774
        %vm777 = vcmask 130112
        %778 = vst.msk [vmem:[#allocation2] sm:$0xff] %vm777, %v775
        %779 = vrot.lane.b32.xlu0 %v557, 112
        %v780 = vpop.permute.xlu0 %779
        %781 = vrot.lane.b32.xlu0 %v591, 112
        %v782 = vpop.permute.xlu0 %781
        %783 = vrot.lane.b32.xlu0 %v594, 112
        %v784 = vpop.permute.xlu0 %783
        %v785 = vsel %vm627, %v780, 0
        %v787 = vsel %vm627, %v782, 0
        %v789 = vsel %vm627, %v784, 0
        %791 = vmatpush.xpose.msra.mxu0 0.0
        %792 = vmatpush.xpose.msra.mxu0 0.0
        %793 = vmatpush.xpose.msra.mxu0 0.0
        %794 = vmatpush.xpose.msra.mxu0 0.0
        %795 = vmatpush.xpose.msra.mxu0 0.0
        %796 = vmatpush.xpose.msra.mxu0 0.0
        %797 = vmatpush.xpose.msra.mxu0 0.0
        %798 = vmatpush.xpose.msra.mxu0 0.0
        %799 = vmatpush.xpose.msra.mxu0 0.0
        %800 = vmatpush.xpose.msra.mxu0 0.0
        %801 = vmatpush.xpose.msra.mxu0 0.0
        %802 = vmatpush.xpose.msra.mxu0 0.0
        %803 = vmatpush.xpose.msra.mxu0 0.0
        %804 = vmatpush.xpose.msra.mxu0 0.0
        %805 = vmatpush.xpose.msra.mxu0 %v789
        %806 = vmatpush.xpose.msra.mxu0 %v787
        %807 = vmatmul.f32.gmra.mxu0 %v785
        %v808 = vpop.f32.mrf.mxu0
        %v809 = vadd.f32 0.0, %v808
        %810 = vdwg.mxu0
        %v811 = vsel %vm657, %v809, -inf
        %812 = vmax.xlane.f32.xlu0 %v811
        %v813 = vpop.xlane.xlu0 %812
        %v814 = vsub.f32 %v809, %v813
        %v815 = vmul.f32 %v814, 1.442695
        %v816 = vpow.pop %v815
        %v817 = vsel %vm657, %v816, 0.0
        %818 = vadd.xlane.f32.xlu0 %v817
        %v819 = vpop.xlane.xlu0 %818
        %v820 = vrcp.pop %v819
        %v821 = vmul.f32 %v816, %v820
        %v822 = vmul.f32 %v821, 0.25
        %v823 = vld [vmem:[%s522] sm:$0xff]
        %v824 = vadd.f32 %v823, %v822
        %825 = vst.msk [vmem:[%s522] sm:$0xff] %vm657, %v824
        %826 = vrot.lane.b32.xlu0 %v622, 112
        %v827 = vpop.permute.xlu0 %826
        %828 = vrot.lane.b32.xlu0 %v625, 112
        %v829 = vpop.permute.xlu0 %828
        %v833 = vsel %vm657, %v821, 0
        %835 = vmatpush.msra.mxu0 0.0
        %836 = vmatpush.msra.mxu0 0.0
        %837 = vmatpush.msra.mxu0 0.0
        %838 = vmatpush.msra.mxu0 0.0
        %839 = vmatpush.msra.mxu0 0.0
        %840 = vmatpush.msra.mxu0 0.0
        %841 = vmatpush.msra.mxu0 0.0
        %842 = vmatpush.msra.mxu0 0.0
        %843 = vmatpush.msra.mxu0 0.0
        %844 = vmatpush.msra.mxu0 0.0
        %845 = vmatpush.msra.mxu0 0.0
        %846 = vmatpush.msra.mxu0 0.0
        %847 = vmatpush.msra.mxu0 0.0
        %848 = vmatpush.msra.mxu0 0.0
        %849 = vmatpush.msra.mxu0 %v829
        %850 = vmatpush.msra.mxu0 %v827
        %851 = vmatmul.f32.gmra.mxu0 %v833
        %v852 = vpop.f32.mrf.mxu0
        %v853 = vadd.f32 0.0, %v852
        %854 = vdwg.mxu0
        %856 = vrot.lane.b32.xlu0 %v853, 16
        %v857 = vpop.permute.xlu0 %856
        %vm859 = vcmask 195712
        %860 = vst.msk [vmem:[#allocation2] sm:$0xff] %vm859, %v857
        %861 = vrot.lane.b32.xlu0 %v557, 104
        %v862 = vpop.permute.xlu0 %861
        %863 = vrot.lane.b32.xlu0 %v591, 104
        %v864 = vpop.permute.xlu0 %863
        %865 = vrot.lane.b32.xlu0 %v594, 104
        %v866 = vpop.permute.xlu0 %865
        %v867 = vsel %vm627, %v862, 0
        %v869 = vsel %vm627, %v864, 0
        %v871 = vsel %vm627, %v866, 0
        %873 = vmatpush.xpose.msra.mxu0 0.0
        %874 = vmatpush.xpose.msra.mxu0 0.0
        %875 = vmatpush.xpose.msra.mxu0 0.0
        %876 = vmatpush.xpose.msra.mxu0 0.0
        %877 = vmatpush.xpose.msra.mxu0 0.0
        %878 = vmatpush.xpose.msra.mxu0 0.0
        %879 = vmatpush.xpose.msra.mxu0 0.0
        %880 = vmatpush.xpose.msra.mxu0 0.0
        %881 = vmatpush.xpose.msra.mxu0 0.0
        %882 = vmatpush.xpose.msra.mxu0 0.0
        %883 = vmatpush.xpose.msra.mxu0 0.0
        %884 = vmatpush.xpose.msra.mxu0 0.0
        %885 = vmatpush.xpose.msra.mxu0 0.0
        %886 = vmatpush.xpose.msra.mxu0 0.0
        %887 = vmatpush.xpose.msra.mxu0 %v871
        %888 = vmatpush.xpose.msra.mxu0 %v869
        %889 = vmatmul.f32.gmra.mxu0 %v867
        %v890 = vpop.f32.mrf.mxu0
        %v891 = vadd.f32 0.0, %v890
        %892 = vdwg.mxu0
        %v893 = vsel %vm657, %v891, -inf
        %894 = vmax.xlane.f32.xlu0 %v893
        %v895 = vpop.xlane.xlu0 %894
        %v896 = vsub.f32 %v891, %v895
        %v897 = vmul.f32 %v896, 1.442695
        %v898 = vpow.pop %v897
        %v899 = vsel %vm657, %v898, 0.0
        %900 = vadd.xlane.f32.xlu0 %v899
        %v901 = vpop.xlane.xlu0 %900
        %v902 = vrcp.pop %v901
        %v903 = vmul.f32 %v898, %v902
        %v904 = vmul.f32 %v903, 0.25
        %v905 = vld [vmem:[%s522] sm:$0xff]
        %v906 = vadd.f32 %v905, %v904
        %907 = vst.msk [vmem:[%s522] sm:$0xff] %vm657, %v906
        %908 = vrot.lane.b32.xlu0 %v622, 104
        %v909 = vpop.permute.xlu0 %908
        %910 = vrot.lane.b32.xlu0 %v625, 104
        %v911 = vpop.permute.xlu0 %910
        %v915 = vsel %vm657, %v903, 0
        %917 = vmatpush.msra.mxu0 0.0
        %918 = vmatpush.msra.mxu0 0.0
        %919 = vmatpush.msra.mxu0 0.0
        %920 = vmatpush.msra.mxu0 0.0
        %921 = vmatpush.msra.mxu0 0.0
        %922 = vmatpush.msra.mxu0 0.0
        %923 = vmatpush.msra.mxu0 0.0
        %924 = vmatpush.msra.mxu0 0.0
        %925 = vmatpush.msra.mxu0 0.0
        %926 = vmatpush.msra.mxu0 0.0
        %927 = vmatpush.msra.mxu0 0.0
        %928 = vmatpush.msra.mxu0 0.0
        %929 = vmatpush.msra.mxu0 0.0
        %930 = vmatpush.msra.mxu0 0.0
        %931 = vmatpush.msra.mxu0 %v911
        %932 = vmatpush.msra.mxu0 %v909
        %933 = vmatmul.f32.gmra.mxu0 %v915
        %v934 = vpop.f32.mrf.mxu0
        %v935 = vadd.f32 0.0, %v934
        %936 = vdwg.mxu0
        %938 = vrot.lane.b32.xlu0 %v935, 24
        %v939 = vpop.permute.xlu0 %938
        %vm941 = vcmask 261312
        %942 = vst.msk [vmem:[#allocation2] sm:$0xff] %vm941, %v939
        %v943 = vld [vmem:[#allocation2] sm:$0xff]
        %v944 = vld [vmem:[#allocation12] sm:$0xff]
        %v945 = vld [vmem:[#allocation12 + $0x8] sm:$0xff]
        %v946 = vld [vmem:[#allocation12 + $0x10] sm:$0xff]
        %v947 = vld [vmem:[#allocation12 + $0x18] sm:$0xff]
        %v948 = vld [vmem:[%s9] sm:$0x1]
        %v950 = vperm.slane %v948, 0
        %v953 = vsel %vm535, %v943, 0
        %955 = vmatpush.msra.mxu0 0.0
        %956 = vmatpush.msra.mxu0 0.0
        %957 = vmatpush.msra.mxu0 0.0
        %958 = vmatpush.msra.mxu0 0.0
        %959 = vmatpush.msra.mxu0 0.0
        %960 = vmatpush.msra.mxu0 0.0
        %961 = vmatpush.msra.mxu0 0.0
        %962 = vmatpush.msra.mxu0 0.0
        %963 = vmatpush.msra.mxu0 0.0
        %964 = vmatpush.msra.mxu0 0.0
        %965 = vmatpush.msra.mxu0 0.0
        %966 = vmatpush.msra.mxu0 0.0
        %967 = vmatpush.msra.mxu0 %v947
        %968 = vmatpush.msra.mxu0 %v946
        %969 = vmatpush.msra.mxu0 %v945
        %970 = vmatpush.msra.mxu0 %v944
        %971 = vmatmul.f32.gmra.mxu0 %v953
        %v972 = vpop.f32.mrf.mxu0
        %v973 = vadd.f32 %v950, %v972
        %974 = vdwg.mxu0
        %v975 = vsel %vm535, %v973, -inf
        %v976 = vrot.slane %v975, 4
        %v977 = vmax.f32 %v975, %v976
        %v978 = vrot.slane %v977, 2
        %v979 = vmax.f32 %v977, %v978
        %v980 = vrot.slane %v979, 1
        %v981 = vmax.f32 %v979, %v980
        %v982 = vsub.f32 %v973, %v981
        %v983 = vmul.f32 %v982, 1.442695
        %v984 = vpow.pop %v983
        %v985 = vsel %vm535, %v984, 0.0
        %v986 = vrot.slane %v985, 4
        %v987 = vadd.f32 %v985, %v986
        %v988 = vrot.slane %v987, 2
        %v989 = vadd.f32 %v987, %v988
        %v990 = vrot.slane %v989, 1
        %v991 = vadd.f32 %v989, %v990
        %v992 = vrcp.pop %v991
        %v993 = vmul.f32 %v984, %v992
        %994 = vst.msk [vmem:[%s515] sm:$0xff] %vm535, %v993
        %s995 = sand.u32 %s265, 1
        %s996 = scalar_lea.sflag [#allocation5], %s995
        %s997 = sand.u32 %s265, 1
        %s998 = smul.addr %s997, 8
        %s999 = scalar_lea.vmem [#allocation14], %s998
        %s1000 = sand.u32 %s291, 1
        %s1001 = scalar_lea.sflag [#allocation16], %s1000
        %s1002 = sand.u32 %s291, 1
        %s1003 = smul.addr %s1002, 8
        %s1004 = scalar_lea.vmem [#allocation15], %s1003
        // Predicated region
        $region85: #{tpu_custom_call.1} parent=59 // pred_check
          %p1005 = pneg %p275
        $region86: #{tpu_custom_call.1} parent=59 // pred_check_branch
          %1007 = sbr.rel (%p1005) target = $region88
        $region87: #{tpu_custom_call.1} parent=59 // pred_region
          %1009 = vsyncadd %s996, 0
          %s1010 = smul.addr %s37, 8
          %s1011 = scalar_lea.hbm %s10, %s1010
          %s1013 = sshll.u32 %s999, 4
          %s1014 = int_to_ptr.vmem [resolvable:$true] %s1013
          %s1015 = sshll.u32 %s1011, 4
          %s1016 = int_to_ptr.hbm [resolvable:$true] %s1015
          %1018 = dma.vmem_to_hbm [thread:$0]  %s1014, 128, %s1016, %s996
        $region88: #{tpu_custom_call.1} parent=59 // pred_fallthru
          _
        // Predicated region
        $region89: #{tpu_custom_call.1} parent=59 // pred_check
          %p1019 = pneg %p301
        $region90: #{tpu_custom_call.1} parent=59 // pred_check_branch
          %1021 = sbr.rel (%p1019) target = $region92
        $region91: #{tpu_custom_call.1} parent=59 // pred_region
          %1023 = vsyncadd %s1001, 0
          %s1024 = smul.addr %s37, 8
          %s1025 = scalar_lea.hbm %s11, %s1024
          %s1027 = sshll.u32 %s1004, 4
          %s1028 = int_to_ptr.vmem [resolvable:$true] %s1027
          %s1029 = sshll.u32 %s1025, 4
          %s1030 = int_to_ptr.hbm [resolvable:$true] %s1029
          %1032 = dma.vmem_to_hbm [thread:$0]  %s1028, 128, %s1030, %s1001
        $region92: #{tpu_custom_call.1} parent=59 // pred_fallthru
          _
      $region60: #{tpu_custom_call.1} parent=5 // pred_fallthru
        _
      %p1033 = scmp.le.s32.totalorder 2, %s32
      // Predicated region
      $region93: #{tpu_custom_call.1} parent=5 // pred_check
        %p1034 = pneg %p1033
      $region94: #{tpu_custom_call.1} parent=5 // pred_check_branch
        %1036 = sbr.rel (%p1034) target = $region96
      $region95: #{tpu_custom_call.1} parent=5 // pred_region
        %s1037 = ssub.s32 %s32, 2
        // Predicated region
        $region97: #{tpu_custom_call.1} parent=95 // pred_check
          %p1038 = pneg %p281
        $region98: #{tpu_custom_call.1} parent=95 // pred_check_branch
          %1040 = sbr.rel (%p1038) target = $region100
        $region99: #{tpu_custom_call.1} parent=95 // pred_region
          %s1041 = sand.u32 %s266, 1
          %s1042 = scalar_lea.sflag [#allocation5], %s1041
          %s1043 = sand.u32 %s266, 1
          %s1044 = smul.addr %s1043, 8
          %s1045 = scalar_lea.vmem [#allocation14], %s1044
          %1047 = dma.done %s1042, 128
        $region100: #{tpu_custom_call.1} parent=95 // pred_fallthru
          _
        // Predicated region
        $region101: #{tpu_custom_call.1} parent=95 // pred_check
          %p1048 = pneg %p307
        $region102: #{tpu_custom_call.1} parent=95 // pred_check_branch
          %1050 = sbr.rel (%p1048) target = $region104
        $region103: #{tpu_custom_call.1} parent=95 // pred_region
          %s1051 = sand.u32 %s292, 1
          %s1052 = scalar_lea.sflag [#allocation16], %s1051
          %s1053 = sand.u32 %s292, 1
          %s1054 = smul.addr %s1053, 8
          %s1055 = scalar_lea.vmem [#allocation15], %s1054
          %1057 = dma.done %s1052, 128
        $region104: #{tpu_custom_call.1} parent=95 // pred_fallthru
          _
      $region96: #{tpu_custom_call.1} parent=5 // pred_fallthru
        _
    $region6: #{tpu_custom_call.1} parent=1 // loop_footer
      %s36 = sadd.s32 1, %s32
    $region7: #{tpu_custom_call.1} parent=1 // loop_footer_branch
      %31 = sbr.rel target = $region3
    $region8: #{tpu_custom_call.1} parent=1 // loop_exit
      _
    %1058 = vsyncpa [#allocation4], 1
    %s1059 = scalar_lea.sflag [#allocation4], 1
    %1060 = vsyncpa %s1059, 1
    %1061 = vsyncpa [#allocation7], 1
    %s1062 = scalar_lea.sflag [#allocation7], 1
    %1063 = vsyncpa %s1062, 1
    %1064 = vsyncpa [#allocation10], 1
    %1065 = vsyncpa [#allocation13], 1
    %1066 = vsyncpa [#allocation5], 1
    %s1067 = scalar_lea.sflag [#allocation5], 1
    %1068 = vsyncpa %s1067, 1
    %1069 = vsyncpa [#allocation16], 1
    %s1070 = scalar_lea.sflag [#allocation16], 1
    %1071 = vsyncpa %s1070, 1

// kernel: tpu_custom_call.1
$region0: #{tpu_custom_call.1}
  #allocation0 [shape = 'u32[]', space=smem, size = 0x4, offset = 0x4, fixed_abs, tag = 'smem constant byte address 0x4 - core index']
  #allocation1 [shape = 'u32[72,128]{1,0:T(1,128)}', space=vmem, size = 0x9000, scoped, tag = 'internal scratch']
  #allocation2 [shape = 'f32[8,32]{1,0:T(8,128)}', space=vmem, size = 0x1000, scoped, tag = 'scratch operand']
  %s0 = inlined_call_operand.hbm [shape: f32[16,32], index: 0, kind: input, shape index: {}]
  %s1 = inlined_call_operand.hbm [shape: f32[32,32], index: 1, kind: input, shape index: {}]
  %s2 = inlined_call_operand.hbm [shape: f32[32,32], index: 2, kind: input, shape index: {}]
  %s3 = inlined_call_operand.vmem [shape: f32[1,32], index: 3, kind: input, shape index: {}]
  %s4 = inlined_call_operand.hbm [shape: f32[32,32], index: 4, kind: input, shape index: {}]
  %s5 = inlined_call_operand.vmem [shape: f32[1,32], index: 5, kind: input, shape index: {}]
  %s6 = inlined_call_operand.hbm [shape: f32[32,32], index: 6, kind: input, shape index: {}]
  %s7 = inlined_call_operand.vmem [shape: f32[1,32], index: 7, kind: input, shape index: {}]
  %s8 = inlined_call_operand.hbm [shape: f32[32,32], index: 8, kind: input, shape index: {}]
  %s9 = inlined_call_operand.vmem [shape: f32[1,32], index: 9, kind: input, shape index: {}]
  %s10 = inlined_call_operand.hbm [shape: f32[16,32], index: 10, kind: output, shape index: {0}]
  %s11 = inlined_call_operand.hbm [shape: f32[16,16], index: 11, kind: output, shape index: {1}]
  %12 = xla_tuple %s10, %s11
  %s13 = sld [smem:[#allocation0]]
  $region105: #{tpu_custom_call.1} parent=0
    _
  %s15 = ssub.s32 1, %s13
  %s16 = scalar_select 0, %s15, %s13
  $region1: #{tpu_custom_call.1} parent=0
    #allocation3 [shape = 'u8[8192]{0}', space=vmem, size = 0x2000, scoped, tag = 'input window, operand 0']
    #allocation4 [shape = 's32[2]{0}', space=sflag, size = 0x8, scoped, tag = 'scoped memory for tpu_custom_call.1']
    #allocation5 [shape = 's32[2]{0}', space=sflag, size = 0x8, scoped, tag = 'scoped memory for tpu_custom_call.1']
    #allocation6 [shape = 'u8[16384]{0}', space=vmem, size = 0x4000, scoped, tag = 'input window, operand 1']
    #allocation7 [shape = 's32[2]{0}', space=sflag, size = 0x8, scoped, tag = 'scoped memory for tpu_custom_call.1']
    #allocation8 [shape = 'u8[16384]{0}', space=vmem, size = 0x4000, scoped, tag = 'input window, operand 2, single buffered']
    #allocation9 [shape = 'u8[16384]{0}', space=vmem, size = 0x4000, scoped, tag = 'input window, operand 4, single buffered']
    #allocation10 [shape = 's32[1]{0}', space=sflag, size = 0x4, scoped, tag = 'scoped memory for tpu_custom_call.1']
    #allocation11 [shape = 'u8[16384]{0}', space=vmem, size = 0x4000, scoped, tag = 'input window, operand 6, single buffered']
    #allocation12 [shape = 'u8[16384]{0}', space=vmem, size = 0x4000, scoped, tag = 'input window, operand 8, single buffered']
    #allocation13 [shape = 's32[1]{0}', space=sflag, size = 0x4, scoped, tag = 'scoped memory for tpu_custom_call.1']
    #allocation14 [shape = 'u8[8192]{0}', space=vmem, size = 0x2000, scoped, tag = 'output window, operand 0']
    #allocation15 [shape = 'u8[8192]{0}', space=vmem, size = 0x2000, scoped, tag = 'output window, operand 1']
    #allocation16 [shape = 's32[2]{0}', space=sflag, size = 0x8, scoped, tag = 'scoped memory for tpu_custom_call.1']
    %17 = vsyncpa [#allocation4], 0
    %s18 = scalar_lea.sflag [#allocation4], 1
    %19 = vsyncpa %s18, 0
    %20 = vsyncpa [#allocation7], 0
    %s21 = scalar_lea.sflag [#allocation7], 1
    %22 = vsyncpa %s21, 0
    %23 = vsyncpa [#allocation10], 0
    %24 = vsyncpa [#allocation13], 0
    %25 = vsyncpa [#allocation5], 0
    %s26 = scalar_lea.sflag [#allocation5], 1
    %27 = vsyncpa %s26, 0
    %28 = vsyncpa [#allocation16], 0
    %s29 = scalar_lea.sflag [#allocation16], 1
    %30 = vsyncpa %s29, 0
    loop: start=0, step=1, limit=4
    $region2: #{tpu_custom_call.1} parent=1 // loop_pre_header
      _
    $region3: #{tpu_custom_call.1} parent=1 // loop_header
      %s32 = sphi 0, %s36
      %p33 = scmp.ge.s32.totalorder %s32, 4
      %s42 = sphi 0, %s44
      %s45 = sphi 0, %s42
      %s46 = sphi 0, %s45
      %s62 = sphi 0, %s46
      %s68 = sphi 0, %s70
      %s71 = sphi 0, %s68
      %s72 = sphi 0, %s71
      %s88 = sphi 0, %s72
      %s92 = sphi 0, %s92
      %s94 = sphi 0, %s92
      %s95 = sphi 0, %s94
      %s109 = sphi 0, %s95
      %s113 = sphi 0, %s113
      %s115 = sphi 0, %s113
      %s116 = sphi 0, %s115
      %s130 = sphi 0, %s116
      %s134 = sphi 0, %s134
      %s136 = sphi 0, %s134
      %s137 = sphi 0, %s136
      %s151 = sphi 0, %s137
      %s155 = sphi 0, %s155
      %s157 = sphi 0, %s155
      %s158 = sphi 0, %s157
      %s172 = sphi 0, %s158
      %s176 = sphi 0, %s176
      %s178 = sphi 0, %s176
      %s179 = sphi 0, %s178
      %s193 = sphi 0, %s179
      %s197 = sphi 0, %s197
      %s199 = sphi 0, %s197
      %s200 = sphi 0, %s199
      %s214 = sphi 0, %s200
      %s218 = sphi 0, %s218
      %s220 = sphi 0, %s218
      %s221 = sphi 0, %s220
      %s235 = sphi 0, %s221
      %s239 = sphi 0, %s239
      %s241 = sphi 0, %s239
      %s242 = sphi 0, %s241
      %s256 = sphi 0, %s242
      %s262 = sphi 0, %s264
      %s265 = sphi 0, %s262
      %s266 = sphi 0, %s265
      %s282 = sphi 0, %s266
      %s288 = sphi 0, %s290
      %s291 = sphi 0, %s288
      %s292 = sphi 0, %s291
      %s308 = sphi 0, %s292
    $region4: #{tpu_custom_call.1} parent=1 // loop_header_branch
      %35 = sbr.rel (%p33) target = $region8
    $region5: #{tpu_custom_call.1} parent=1 // loop_body
      %s37 = ssub.s32 %s32, 1
      %s38 = ssub.s32 %s32, 2
      %s39 = sadd.s32 %s32, 1
      %s40 = ssub.s32 %s32, %s39
      %p41 = scmp.eq.s32.totalorder %s40, 0
      %s43 = sadd.s32 %s42, 1
      %s44 = scalar_select %p41, %s42, %s43
      %p47 = pneg %p41
      %p48 = scmp.eq.s32.totalorder %s32, 1
      %p49 = por %p47, %p48
      %p50 = scmp.ne.s32.totalorder %s42, %s45
      %p51 = scmp.eq.s32.totalorder %s32, 0
      %p52 = por %p50, %p51
      %p53 = scmp.ne.s32.totalorder %s42, %s45
      %p54 = scmp.eq.s32.totalorder %s37, 1
      %p55 = por %p53, %p54
      %p56 = scmp.ne.s32.totalorder %s45, %s46
      %p57 = scmp.eq.s32.totalorder %s37, 0
      %p58 = por %p56, %p57
      %p59 = scmp.ne.s32.totalorder %s45, %s46
      %p60 = scmp.eq.s32.totalorder %s38, 1
      %p61 = por %p59, %p60
      %p63 = scmp.ne.s32.totalorder %s46, %s62
      %p64 = scmp.eq.s32.totalorder %s38, 0
      %p65 = por %p63, %p64
      %s66 = ssub.s32 %s32, %s39
      %p67 = scmp.eq.s32.totalorder %s66, 0
      %s69 = sadd.s32 %s68, 1
      %s70 = scalar_select %p67, %s68, %s69
      %p73 = pneg %p67
      %p74 = scmp.eq.s32.totalorder %s32, 1
      %p75 = por %p73, %p74
      %p76 = scmp.ne.s32.totalorder %s68, %s71
      %p77 = scmp.eq.s32.totalorder %s32, 0
      %p78 = por %p76, %p77
      %p79 = scmp.ne.s32.totalorder %s68, %s71
      %p80 = scmp.eq.s32.totalorder %s37, 1
      %p81 = por %p79, %p80
      %p82 = scmp.ne.s32.totalorder %s71, %s72
      %p83 = scmp.eq.s32.totalorder %s37, 0
      %p84 = por %p82, %p83
      %p85 = scmp.ne.s32.totalorder %s71, %s72
      %p86 = scmp.eq.s32.totalorder %s38, 1
      %p87 = por %p85, %p86
      %p89 = scmp.ne.s32.totalorder %s72, %s88
      %p90 = scmp.eq.s32.totalorder %s38, 0
      %p91 = por %p89, %p90
      %s93 = sadd.s32 %s92, 1
      %p96 = scmp.eq.s32.totalorder %s32, 1
      %p97 = scmp.ne.s32.totalorder %s92, %s94
      %p98 = scmp.eq.s32.totalorder %s32, 0
      %p99 = por %p97, %p98
      %p100 = scmp.ne.s32.totalorder %s92, %s94
      %p101 = scmp.eq.s32.totalorder %s37, 1
      %p102 = por %p100, %p101
      %p103 = scmp.ne.s32.totalorder %s94, %s95
      %p104 = scmp.eq.s32.totalorder %s37, 0
      %p105 = por %p103, %p104
      %p106 = scmp.ne.s32.totalorder %s94, %s95
      %p107 = scmp.eq.s32.totalorder %s38, 1
      %p108 = por %p106, %p107
      %p110 = scmp.ne.s32.totalorder %s95, %s109
      %p111 = scmp.eq.s32.totalorder %s38, 0
      %p112 = por %p110, %p111
      %s114 = sadd.s32 %s113, 1
      %p117 = scmp.eq.s32.totalorder %s32, 1
      %p118 = scmp.ne.s32.totalorder %s113, %s115
      %p119 = scmp.eq.s32.totalorder %s32, 0
      %p120 = por %p118, %p119
      %p121 = scmp.ne.s32.totalorder %s113, %s115
      %p122 = scmp.eq.s32.totalorder %s37, 1
      %p123 = por %p121, %p122
      %p124 = scmp.ne.s32.totalorder %s115, %s116
      %p125 = scmp.eq.s32.totalorder %s37, 0
      %p126 = por %p124, %p125
      %p127 = scmp.ne.s32.totalorder %s115, %s116
      %p128 = scmp.eq.s32.totalorder %s38, 1
      %p129 = por %p127, %p128
      %p131 = scmp.ne.s32.totalorder %s116, %s130
      %p132 = scmp.eq.s32.totalorder %s38, 0
      %p133 = por %p131, %p132
      %s135 = sadd.s32 %s134, 1
      %p138 = scmp.eq.s32.totalorder %s32, 1
      %p139 = scmp.ne.s32.totalorder %s134, %s136
      %p140 = scmp.eq.s32.totalorder %s32, 0
      %p141 = por %p139, %p140
      %p142 = scmp.ne.s32.totalorder %s134, %s136
      %p143 = scmp.eq.s32.totalorder %s37, 1
      %p144 = por %p142, %p143
      %p145 = scmp.ne.s32.totalorder %s136, %s137
      %p146 = scmp.eq.s32.totalorder %s37, 0
      %p147 = por %p145, %p146
      %p148 = scmp.ne.s32.totalorder %s136, %s137
      %p149 = scmp.eq.s32.totalorder %s38, 1
      %p150 = por %p148, %p149
      %p152 = scmp.ne.s32.totalorder %s137, %s151
      %p153 = scmp.eq.s32.totalorder %s38, 0
      %p154 = por %p152, %p153
      %s156 = sadd.s32 %s155, 1
      %p159 = scmp.eq.s32.totalorder %s32, 1
      %p160 = scmp.ne.s32.totalorder %s155, %s157
      %p161 = scmp.eq.s32.totalorder %s32, 0
      %p162 = por %p160, %p161
      %p163 = scmp.ne.s32.totalorder %s155, %s157
      %p164 = scmp.eq.s32.totalorder %s37, 1
      %p165 = por %p163, %p164
      %p166 = scmp.ne.s32.totalorder %s157, %s158
      %p167 = scmp.eq.s32.totalorder %s37, 0
      %p168 = por %p166, %p167
      %p169 = scmp.ne.s32.totalorder %s157, %s158
      %p170 = scmp.eq.s32.totalorder %s38, 1
      %p171 = por %p169, %p170
      %p173 = scmp.ne.s32.totalorder %s158, %s172
      %p174 = scmp.eq.s32.totalorder %s38, 0
      %p175 = por %p173, %p174
      %s177 = sadd.s32 %s176, 1
      %p180 = scmp.eq.s32.totalorder %s32, 1
      %p181 = scmp.ne.s32.totalorder %s176, %s178
      %p182 = scmp.eq.s32.totalorder %s32, 0
      %p183 = por %p181, %p182
      %p184 = scmp.ne.s32.totalorder %s176, %s178
      %p185 = scmp.eq.s32.totalorder %s37, 1
      %p186 = por %p184, %p185
      %p187 = scmp.ne.s32.totalorder %s178, %s179
      %p188 = scmp.eq.s32.totalorder %s37, 0
      %p189 = por %p187, %p188
      %p190 = scmp.ne.s32.totalorder %s178, %s179
      %p191 = scmp.eq.s32.totalorder %s38, 1
      %p192 = por %p190, %p191
      %p194 = scmp.ne.s32.totalorder %s179, %s193
      %p195 = scmp.eq.s32.totalorder %s38, 0
      %p196 = por %p194, %p195
      %s198 = sadd.s32 %s197, 1
      %p201 = scmp.eq.s32.totalorder %s32, 1
      %p202 = scmp.ne.s32.totalorder %s197, %s199
      %p203 = scmp.eq.s32.totalorder %s32, 0
      %p204 = por %p202, %p203
      %p205 = scmp.ne.s32.totalorder %s197, %s199
      %p206 = scmp.eq.s32.totalorder %s37, 1
      %p207 = por %p205, %p206
      %p208 = scmp.ne.s32.totalorder %s199, %s200
      %p209 = scmp.eq.s32.totalorder %s37, 0
      %p210 = por %p208, %p209
      %p211 = scmp.ne.s32.totalorder %s199, %s200
      %p212 = scmp.eq.s32.totalorder %s38, 1
      %p213 = por %p211, %p212
      %p215 = scmp.ne.s32.totalorder %s200, %s214
      %p216 = scmp.eq.s32.totalorder %s38, 0
      %p217 = por %p215, %p216
      %s219 = sadd.s32 %s218, 1
      %p222 = scmp.eq.s32.totalorder %s32, 1
      %p223 = scmp.ne.s32.totalorder %s218, %s220
      %p224 = scmp.eq.s32.totalorder %s32, 0
      %p225 = por %p223, %p224
      %p226 = scmp.ne.s32.totalorder %s218, %s220
      %p227 = scmp.eq.s32.totalorder %s37, 1
      %p228 = por %p226, %p227
      %p229 = scmp.ne.s32.totalorder %s220, %s221
      %p230 = scmp.eq.s32.totalorder %s37, 0
      %p231 = por %p229, %p230
      %p232 = scmp.ne.s32.totalorder %s220, %s221
      %p233 = scmp.eq.s32.totalorder %s38, 1
      %p234 = por %p232, %p233
      %p236 = scmp.ne.s32.totalorder %s221, %s235
      %p237 = scmp.eq.s32.totalorder %s38, 0
      %p238 = por %p236, %p237
      %s240 = sadd.s32 %s239, 1
      %p243 = scmp.eq.s32.totalorder %s32, 1
      %p244 = scmp.ne.s32.totalorder %s239, %s241
      %p245 = scmp.eq.s32.totalorder %s32, 0
      %p246 = por %p244, %p245
      %p247 = scmp.ne.s32.totalorder %s239, %s241
      %p248 = scmp.eq.s32.totalorder %s37, 1
      %p249 = por %p247, %p248
      %p250 = scmp.ne.s32.totalorder %s241, %s242
      %p251 = scmp.eq.s32.totalorder %s37, 0
      %p252 = por %p250, %p251
      %p253 = scmp.ne.s32.totalorder %s241, %s242
      %p254 = scmp.eq.s32.totalorder %s38, 1
      %p255 = por %p253, %p254
      %p257 = scmp.ne.s32.totalorder %s242, %s256
      %p258 = scmp.eq.s32.totalorder %s38, 0
      %p259 = por %p257, %p258
      %s260 = ssub.s32 %s32, %s39
      %p261 = scmp.eq.s32.totalorder %s260, 0
      %s263 = sadd.s32 %s262, 1
      %s264 = scalar_select %p261, %s262, %s263
      %p267 = pneg %p261
      %p268 = scmp.eq.s32.totalorder %s32, 1
      %p269 = por %p267, %p268
      %p270 = scmp.ne.s32.totalorder %s262, %s265
      %p271 = scmp.eq.s32.totalorder %s32, 0
      %p272 = por %p270, %p271
      %p273 = scmp.ne.s32.totalorder %s262, %s265
      %p274 = scmp.eq.s32.totalorder %s37, 1
      %p275 = por %p273, %p274
      %p276 = scmp.ne.s32.totalorder %s265, %s266
      %p277 = scmp.eq.s32.totalorder %s37, 0
      %p278 = por %p276, %p277
      %p279 = scmp.ne.s32.totalorder %s265, %s266
      %p280 = scmp.eq.s32.totalorder %s38, 1
      %p281 = por %p279, %p280
      %p283 = scmp.ne.s32.totalorder %s266, %s282
      %p284 = scmp.eq.s32.totalorder %s38, 0
      %p285 = por %p283, %p284
      %s286 = ssub.s32 %s32, %s39
      %p287 = scmp.eq.s32.totalorder %s286, 0
      %s289 = sadd.s32 %s288, 1
      %s290 = scalar_select %p287, %s288, %s289
      %p293 = pneg %p287
      %p294 = scmp.eq.s32.totalorder %s32, 1
      %p295 = por %p293, %p294
      %p296 = scmp.ne.s32.totalorder %s288, %s291
      %p297 = scmp.eq.s32.totalorder %s32, 0
      %p298 = por %p296, %p297
      %p299 = scmp.ne.s32.totalorder %s288, %s291
      %p300 = scmp.eq.s32.totalorder %s37, 1
      %p301 = por %p299, %p300
      %p302 = scmp.ne.s32.totalorder %s291, %s292
      %p303 = scmp.eq.s32.totalorder %s37, 0
      %p304 = por %p302, %p303
      %p305 = scmp.ne.s32.totalorder %s291, %s292
      %p306 = scmp.eq.s32.totalorder %s38, 1
      %p307 = por %p305, %p306
      %p309 = scmp.ne.s32.totalorder %s292, %s308
      %p310 = scmp.eq.s32.totalorder %s38, 0
      %p311 = por %p309, %p310
      %p312 = scmp.le.s32.totalorder 1, %s32
      %p313 = scmp.lt.s32.totalorder %s32, 3
      %p314 = pnand %p312, %p313
      %p315 = pneg %p314
      // Predicated region
      $region9: #{tpu_custom_call.1} parent=5 // pred_check
        _
      $region10: #{tpu_custom_call.1} parent=5 // pred_check_branch
        %317 = sbr.rel (%p314) target = $region12
      $region11: #{tpu_custom_call.1} parent=5 // pred_region
        %s318 = ssub.s32 %s32, 1
        // Predicated region
        $region13: #{tpu_custom_call.1} parent=11 // pred_check
          %p319 = pneg %p105
        $region14: #{tpu_custom_call.1} parent=11 // pred_check_branch
          %321 = sbr.rel (%p319) target = $region16
        $region15: #{tpu_custom_call.1} parent=11 // pred_region
          %323 = vsyncadd [#allocation7], 0
          %s324 = sshll.u32 %s2, 4
          %s325 = int_to_ptr.hbm [resolvable:$true] %s324
          %s326 = sshll.u32 [#allocation8], 4
          %s327 = int_to_ptr.vmem [resolvable:$true] %s326
          %332 = dma.hbm_to_vmem [thread:$0]  %s325, 512, %s327, [#allocation7], 128, 128, 8
        $region16: #{tpu_custom_call.1} parent=11 // pred_fallthru
          _
        // Predicated region
        $region17: #{tpu_custom_call.1} parent=11 // pred_check
          %p333 = pneg %p126
        $region18: #{tpu_custom_call.1} parent=11 // pred_check_branch
          %335 = sbr.rel (%p333) target = $region20
        $region19: #{tpu_custom_call.1} parent=11 // pred_region
          _
        $region20: #{tpu_custom_call.1} parent=11 // pred_fallthru
          _
        // Predicated region
        $region21: #{tpu_custom_call.1} parent=11 // pred_check
          %p336 = pneg %p147
        $region22: #{tpu_custom_call.1} parent=11 // pred_check_branch
          %338 = sbr.rel (%p336) target = $region24
        $region23: #{tpu_custom_call.1} parent=11 // pred_region
          %340 = vsyncadd [#allocation10], 0
          %s341 = sshll.u32 %s4, 4
          %s342 = int_to_ptr.hbm [resolvable:$true] %s341
          %s343 = sshll.u32 [#allocation9], 4
          %s344 = int_to_ptr.vmem [resolvable:$true] %s343
          %349 = dma.hbm_to_vmem [thread:$0]  %s342, 512, %s344, [#allocation10], 128, 128, 8
        $region24: #{tpu_custom_call.1} parent=11 // pred_fallthru
          _
        // Predicated region
        $region25: #{tpu_custom_call.1} parent=11 // pred_check
          %p350 = pneg %p168
        $region26: #{tpu_custom_call.1} parent=11 // pred_check_branch
          %352 = sbr.rel (%p350) target = $region28
        $region27: #{tpu_custom_call.1} parent=11 // pred_region
          _
        $region28: #{tpu_custom_call.1} parent=11 // pred_fallthru
          _
        // Predicated region
        $region29: #{tpu_custom_call.1} parent=11 // pred_check
          %p353 = pneg %p189
        $region30: #{tpu_custom_call.1} parent=11 // pred_check_branch
          %355 = sbr.rel (%p353) target = $region32
        $region31: #{tpu_custom_call.1} parent=11 // pred_region
          %357 = vsyncadd [#allocation10], 0
          %s358 = sshll.u32 %s6, 4
          %s359 = int_to_ptr.hbm [resolvable:$true] %s358
          %s360 = sshll.u32 [#allocation11], 4
          %s361 = int_to_ptr.vmem [resolvable:$true] %s360
          %366 = dma.hbm_to_vmem [thread:$0]  %s359, 512, %s361, [#allocation10], 128, 128, 8
        $region32: #{tpu_custom_call.1} parent=11 // pred_fallthru
          _
        // Predicated region
        $region33: #{tpu_custom_call.1} parent=11 // pred_check
          %p367 = pneg %p210
        $region34: #{tpu_custom_call.1} parent=11 // pred_check_branch
          %369 = sbr.rel (%p367) target = $region36
        $region35: #{tpu_custom_call.1} parent=11 // pred_region
          _
        $region36: #{tpu_custom_call.1} parent=11 // pred_fallthru
          _
        // Predicated region
        $region37: #{tpu_custom_call.1} parent=11 // pred_check
          %p370 = pneg %p231
        $region38: #{tpu_custom_call.1} parent=11 // pred_check_branch
          %372 = sbr.rel (%p370) target = $region40
        $region39: #{tpu_custom_call.1} parent=11 // pred_region
          %374 = vsyncadd [#allocation13], 0
          %s375 = sshll.u32 %s8, 4
          %s376 = int_to_ptr.hbm [resolvable:$true] %s375
          %s377 = sshll.u32 [#allocation12], 4
          %s378 = int_to_ptr.vmem [resolvable:$true] %s377
          %383 = dma.hbm_to_vmem [thread:$0]  %s376, 512, %s378, [#allocation13], 128, 128, 8
        $region40: #{tpu_custom_call.1} parent=11 // pred_fallthru
          _
        // Predicated region
        $region41: #{tpu_custom_call.1} parent=11 // pred_check
          %p384 = pneg %p252
        $region42: #{tpu_custom_call.1} parent=11 // pred_check_branch
          %386 = sbr.rel (%p384) target = $region44
        $region43: #{tpu_custom_call.1} parent=11 // pred_region
          _
        $region44: #{tpu_custom_call.1} parent=11 // pred_fallthru
          _
      $region12: #{tpu_custom_call.1} parent=5 // pred_fallthru
        _
      %p387 = scmp.lt.s32.totalorder %s32, 2
      // Predicated region
      $region45: #{tpu_custom_call.1} parent=5 // pred_check
        %p388 = pneg %p387
      $region46: #{tpu_custom_call.1} parent=5 // pred_check_branch
        %390 = sbr.rel (%p388) target = $region48
      $region47: #{tpu_custom_call.1} parent=5 // pred_region
        // Predicated region
        $region49: #{tpu_custom_call.1} parent=47 // pred_check
          %p391 = pneg %p52
        $region50: #{tpu_custom_call.1} parent=47 // pred_check_branch
          %393 = sbr.rel (%p391) target = $region52
        $region51: #{tpu_custom_call.1} parent=47 // pred_region
          %s394 = sand.u32 %s42, 1
          %s395 = scalar_lea.sflag [#allocation4], %s394
          %s396 = sand.u32 %s42, 1
          %s397 = smul.addr %s396, 8
          %s398 = scalar_lea.vmem [#allocation3], %s397
          %400 = vsyncadd %s395, 0
          %s401 = smul.addr %s32, 8
          %s402 = scalar_lea.hbm %s0, %s401
          %s404 = sshll.u32 %s402, 4
          %s405 = int_to_ptr.hbm [resolvable:$true] %s404
          %s406 = sshll.u32 %s398, 4
          %s407 = int_to_ptr.vmem [resolvable:$true] %s406
          %409 = dma.hbm_to_vmem [thread:$0]  %s405, 128, %s407, %s395
        $region52: #{tpu_custom_call.1} parent=47 // pred_fallthru
          _
        // Predicated region
        $region53: #{tpu_custom_call.1} parent=47 // pred_check
          %p410 = pneg %p78
        $region54: #{tpu_custom_call.1} parent=47 // pred_check_branch
          %412 = sbr.rel (%p410) target = $region56
        $region55: #{tpu_custom_call.1} parent=47 // pred_region
          %s413 = sand.u32 %s32, 1
          %s414 = scalar_lea.sflag [#allocation7], %s413
          %s415 = sand.u32 %s68, 1
          %s416 = smul.addr %s415, 16
          %s417 = scalar_lea.vmem [#allocation6], %s416
          %s418 = smul.u32 2, %s32
          %420 = vsyncadd %s414, 0
          %s421 = smul.addr %s418, 8
          %s422 = scalar_lea.hbm %s1, %s421
          %s423 = sshll.u32 %s422, 4
          %s424 = int_to_ptr.hbm [resolvable:$true] %s423
          %s425 = sshll.u32 %s417, 4
          %s426 = int_to_ptr.vmem [resolvable:$true] %s425
          %431 = dma.hbm_to_vmem [thread:$0]  %s424, 256, %s426, %s414, 128, 128, 8
        $region56: #{tpu_custom_call.1} parent=47 // pred_fallthru
          _
      $region48: #{tpu_custom_call.1} parent=5 // pred_fallthru
        _
      %p432 = scmp.le.s32.totalorder 1, %s32
      %p433 = scmp.lt.s32.totalorder %s32, 3
      %p434 = pnand %p432, %p433
      %p435 = pneg %p434
      // Predicated region
      $region57: #{tpu_custom_call.1} parent=5 // pred_check
        _
      $region58: #{tpu_custom_call.1} parent=5 // pred_check_branch
        %437 = sbr.rel (%p434) target = $region60
      $region59: #{tpu_custom_call.1} parent=5 // pred_region
        %s438 = ssub.s32 %s32, 1
        %s439 = sand.u32 %s45, 1
        %s440 = scalar_lea.sflag [#allocation4], %s439
        %s441 = sand.u32 %s45, 1
        %s442 = smul.addr %s441, 8
        %s443 = scalar_lea.vmem [#allocation3], %s442
        // Predicated region
        $region61: #{tpu_custom_call.1} parent=59 // pred_check
          %p444 = pneg %p58
        $region62: #{tpu_custom_call.1} parent=59 // pred_check_branch
          %446 = sbr.rel (%p444) target = $region64
        $region63: #{tpu_custom_call.1} parent=59 // pred_region
          %448 = dma.done %s440, 128
        $region64: #{tpu_custom_call.1} parent=59 // pred_fallthru
          _
        %s449 = sand.u32 %s37, 1
        %s450 = scalar_lea.sflag [#allocation7], %s449
        %s451 = sand.u32 %s71, 1
        %s452 = smul.addr %s451, 16
        %s453 = scalar_lea.vmem [#allocation6], %s452
        // Predicated region
        $region65: #{tpu_custom_call.1} parent=59 // pred_check
          %p454 = pneg %p84
        $region66: #{tpu_custom_call.1} parent=59 // pred_check_branch
          %456 = sbr.rel (%p454) target = $region68
        $region67: #{tpu_custom_call.1} parent=59 // pred_region
          %458 = dma.done %s450, 256
        $region68: #{tpu_custom_call.1} parent=59 // pred_fallthru
          _
        // Predicated region
        $region69: #{tpu_custom_call.1} parent=59 // pred_check
          %p459 = pneg %p105
        $region70: #{tpu_custom_call.1} parent=59 // pred_check_branch
          %461 = sbr.rel (%p459) target = $region72
        $region71: #{tpu_custom_call.1} parent=59 // pred_region
          %463 = dma.done [#allocation7], 512
        $region72: #{tpu_custom_call.1} parent=59 // pred_fallthru
          _
        // Predicated region
        $region73: #{tpu_custom_call.1} parent=59 // pred_check
          %p464 = pneg %p147
        $region74: #{tpu_custom_call.1} parent=59 // pred_check_branch
          %466 = sbr.rel (%p464) target = $region76
        $region75: #{tpu_custom_call.1} parent=59 // pred_region
          %468 = dma.done [#allocation10], 512
        $region76: #{tpu_custom_call.1} parent=59 // pred_fallthru
          _
        // Predicated region
        $region77: #{tpu_custom_call.1} parent=59 // pred_check
          %p469 = pneg %p189
        $region78: #{tpu_custom_call.1} parent=59 // pred_check_branch
          %471 = sbr.rel (%p469) target = $region80
        $region79: #{tpu_custom_call.1} parent=59 // pred_region
          %473 = dma.done [#allocation10], 512
        $region80: #{tpu_custom_call.1} parent=59 // pred_fallthru
          _
        // Predicated region
        $region81: #{tpu_custom_call.1} parent=59 // pred_check
          %p474 = pneg %p231
        $region82: #{tpu_custom_call.1} parent=59 // pred_check_branch
          %476 = sbr.rel (%p474) target = $region84
        $region83: #{tpu_custom_call.1} parent=59 // pred_region
          %478 = dma.done [#allocation13], 512
        $region84: #{tpu_custom_call.1} parent=59 // pred_fallthru
          _
        %s479 = sand.u32 %s45, 1
        %s480 = scalar_lea.sflag [#allocation4], %s479
        %s481 = sand.u32 %s45, 1
        %s482 = smul.addr %s481, 8
        %s483 = scalar_lea.vmem [#allocation3], %s482
        %p484 = pneg %p58
        %p485 = pneg %p55
        %s486 = sand.u32 %s37, 1
        %s487 = scalar_lea.sflag [#allocation7], %s486
        %s488 = sand.u32 %s71, 1
        %s489 = smul.addr %s488, 16
        %s490 = scalar_lea.vmem [#allocation6], %s489
        %p491 = pneg %p84
        %p492 = pneg %p81
        %p493 = pneg %p105
        %p494 = pneg %p102
        %p495 = pneg %p126
        %p496 = pneg %p123
        %p497 = pneg %p147
        %p498 = pneg %p144
        %p499 = pneg %p168
        %p500 = pneg %p165
        %p501 = pneg %p189
        %p502 = pneg %p186
        %p503 = pneg %p210
        %p504 = pneg %p207
        %p505 = pneg %p231
        %p506 = pneg %p228
        %p507 = pneg %p252
        %p508 = pneg %p249
        %p509 = pneg %p278
        %p510 = pneg %p275
        %s511 = sand.u32 %s265, 1
        %s512 = scalar_lea.sflag [#allocation5], %s511
        %s513 = sand.u32 %s265, 1
        %s514 = smul.addr %s513, 8
        %s515 = scalar_lea.vmem [#allocation14], %s514
        %p516 = pneg %p304
        %p517 = pneg %p301
        %s518 = sand.u32 %s291, 1
        %s519 = scalar_lea.sflag [#allocation16], %s518
        %s520 = sand.u32 %s291, 1
        %s521 = smul.addr %s520, 8
        %s522 = scalar_lea.vmem [#allocation15], %s521
        %s523 = smul.u32 2, %s37
        %v524 = vld [vmem:[%s443] sm:$0xff]
        %v525 = vld [vmem:[%s453] sm:$0xff]
        %v526 = vld [vmem:[%s453 + $0x8] sm:$0xff]
        %v527 = vld [vmem:[#allocation8] sm:$0xff]
        %v528 = vld [vmem:[#allocation8 + $0x8] sm:$0xff]
        %v529 = vld [vmem:[#allocation8 + $0x10] sm:$0xff]
        %v530 = vld [vmem:[#allocation8 + $0x18] sm:$0xff]
        %v531 = vld [vmem:[%s3] sm:$0x1]
        %v533 = vperm.slane %v531, 0
        %vm535 = vcmask 261120
        %v537 = vsel %vm535, %v524, 0
        %539 = vmatpush.msra.mxu0 0.0
        %540 = vmatpush.msra.mxu0 0.0
        %541 = vmatpush.msra.mxu0 0.0
        %542 = vmatpush.msra.mxu0 0.0
        %543 = vmatpush.msra.mxu0 0.0
        %544 = vmatpush.msra.mxu0 0.0
        %545 = vmatpush.msra.mxu0 0.0
        %546 = vmatpush.msra.mxu0 0.0
        %547 = vmatpush.msra.mxu0 0.0
        %548 = vmatpush.msra.mxu0 0.0
        %549 = vmatpush.msra.mxu0 0.0
        %550 = vmatpush.msra.mxu0 0.0
        %551 = vmatpush.msra.mxu0 %v530
        %552 = vmatpush.msra.mxu0 %v529
        %553 = vmatpush.msra.mxu0 %v528
        %554 = vmatpush.msra.mxu0 %v527
        %555 = vmatmul.f32.gmra.mxu0 %v537
        %v556 = vpop.f32.mrf.mxu0
        %v557 = vadd.f32 %v533, %v556
        %558 = vdwg.mxu0
        %v559 = vld [vmem:[#allocation9] sm:$0xff]
        %v560 = vld [vmem:[#allocation9 + $0x8] sm:$0xff]
        %v561 = vld [vmem:[#allocation9 + $0x10] sm:$0xff]
        %v562 = vld [vmem:[#allocation9 + $0x18] sm:$0xff]
        %v563 = vld [vmem:[%s5] sm:$0x1]
        %v565 = vperm.slane %v563, 0
        %v568 = vsel %vm535, %v525, 0
        %v571 = vsel %vm535, %v526, 0
        %573 = vmatpush.msra.mxu0 0.0
        %574 = vmatpush.msra.mxu0 0.0
        %575 = vmatpush.msra.mxu0 0.0
        %576 = vmatpush.msra.mxu0 0.0
        %577 = vmatpush.msra.mxu0 0.0
        %578 = vmatpush.msra.mxu0 0.0
        %579 = vmatpush.msra.mxu0 0.0
        %580 = vmatpush.msra.mxu0 0.0
        %581 = vmatpush.msra.mxu0 0.0
        %582 = vmatpush.msra.mxu0 0.0
        %583 = vmatpush.msra.mxu0 0.0
        %584 = vmatpush.msra.mxu0 0.0
        %585 = vmatpush.msra.mxu0 %v562
        %586 = vmatpush.msra.mxu0 %v561
        %587 = vmatpush.msra.mxu0 %v560
        %588 = vmatpush.msra.mxu0 %v559
        %589 = vmatmul.f32.gmra.mxu0 %v568
        %v590 = vpop.f32.mrf.mxu0
        %v591 = vadd.f32 %v565, %v590
        %592 = vmatmul.f32.gmra.mxu0 %v571
        %v593 = vpop.f32.mrf.mxu0
        %v594 = vadd.f32 %v565, %v593
        %595 = vdwg.mxu0
        %v596 = vld [vmem:[#allocation11] sm:$0xff]
        %v597 = vld [vmem:[#allocation11 + $0x8] sm:$0xff]
        %v598 = vld [vmem:[#allocation11 + $0x10] sm:$0xff]
        %v599 = vld [vmem:[#allocation11 + $0x18] sm:$0xff]
        %v600 = vld [vmem:[%s7] sm:$0x1]
        %v602 = vperm.slane %v600, 0
        %604 = vmatpush.msra.mxu0 0.0
        %605 = vmatpush.msra.mxu0 0.0
        %606 = vmatpush.msra.mxu0 0.0
        %607 = vmatpush.msra.mxu0 0.0
        %608 = vmatpush.msra.mxu0 0.0
        %609 = vmatpush.msra.mxu0 0.0
        %610 = vmatpush.msra.mxu0 0.0
        %611 = vmatpush.msra.mxu0 0.0
        %612 = vmatpush.msra.mxu0 0.0
        %613 = vmatpush.msra.mxu0 0.0
        %614 = vmatpush.msra.mxu0 0.0
        %615 = vmatpush.msra.mxu0 0.0
        %616 = vmatpush.msra.mxu0 %v599
        %617 = vmatpush.msra.mxu0 %v598
        %618 = vmatpush.msra.mxu0 %v597
        %619 = vmatpush.msra.mxu0 %v596
        %620 = vmatmul.f32.gmra.mxu0 %v568
        %v621 = vpop.f32.mrf.mxu0
        %v622 = vadd.f32 %v602, %v621
        %623 = vmatmul.f32.gmra.mxu0 %v571
        %v624 = vpop.f32.mrf.mxu0
        %v625 = vadd.f32 %v602, %v624
        %626 = vdwg.mxu0
        %vm627 = vcmask 64512
        %v629 = vsel %vm627, %v557, 0
        %v632 = vsel %vm627, %v591, 0
        %v635 = vsel %vm627, %v594, 0
        %637 = vmatpush.xpose.msra.mxu0 0.0
        %638 = vmatpush.xpose.msra.mxu0 0.0
        %639 = vmatpush.xpose.msra.mxu0 0.0
        %640 = vmatpush.xpose.msra.mxu0 0.0
        %641 = vmatpush.xpose.msra.mxu0 0.0
        %642 = vmatpush.xpose.msra.mxu0 0.0
        %643 = vmatpush.xpose.msra.mxu0 0.0
        %644 = vmatpush.xpose.msra.mxu0 0.0
        %645 = vmatpush.xpose.msra.mxu0 0.0
        %646 = vmatpush.xpose.msra.mxu0 0.0
        %647 = vmatpush.xpose.msra.mxu0 0.0
        %648 = vmatpush.xpose.msra.mxu0 0.0
        %649 = vmatpush.xpose.msra.mxu0 0.0
        %650 = vmatpush.xpose.msra.mxu0 0.0
        %651 = vmatpush.xpose.msra.mxu0 %v635
        %652 = vmatpush.xpose.msra.mxu0 %v632
        %653 = vmatmul.f32.gmra.mxu0 %v629
        %v654 = vpop.f32.mrf.mxu0
        %v655 = vadd.f32 0.0, %v654
        %656 = vdwg.mxu0
        %vm657 = vcmask 130048
        %v658 = vsel %vm657, %v655, -inf
        %659 = vmax.xlane.f32.xlu0 %v658
        %v660 = vpop.xlane.xlu0 %659
        %v661 = vsub.f32 %v655, %v660
        %v662 = vmul.f32 %v661, 1.442695
        %v663 = vpow.pop %v662
        %v664 = vsel %vm657, %v663, 0.0
        %665 = vadd.xlane.f32.xlu0 %v664
        %v666 = vpop.xlane.xlu0 %665
        %v667 = vrcp.pop %v666
        %v668 = vmul.f32 %v663, %v667
        %v669 = vmul.f32 %v668, 0.25
        %670 = vst.msk [vmem:[%s522] sm:$0xff] %vm657, %v669
        %v672 = vsel %vm657, %v668, 0
        %674 = vmatpush.msra.mxu0 0.0
        %675 = vmatpush.msra.mxu0 0.0
        %676 = vmatpush.msra.mxu0 0.0
        %677 = vmatpush.msra.mxu0 0.0
        %678 = vmatpush.msra.mxu0 0.0
        %679 = vmatpush.msra.mxu0 0.0
        %680 = vmatpush.msra.mxu0 0.0
        %681 = vmatpush.msra.mxu0 0.0
        %682 = vmatpush.msra.mxu0 0.0
        %683 = vmatpush.msra.mxu0 0.0
        %684 = vmatpush.msra.mxu0 0.0
        %685 = vmatpush.msra.mxu0 0.0
        %686 = vmatpush.msra.mxu0 0.0
        %687 = vmatpush.msra.mxu0 0.0
        %688 = vmatpush.msra.mxu0 %v625
        %689 = vmatpush.msra.mxu0 %v622
        %690 = vmatmul.f32.gmra.mxu0 %v672
        %v691 = vpop.f32.mrf.mxu0
        %v692 = vadd.f32 0.0, %v691
        %693 = vdwg.mxu0
        %694 = vst.msk [vmem:[#allocation2] sm:$0xff] %vm627, %v692
        %695 = vrot.lane.b32.xlu0 %v557, 120
        %v696 = vpop.permute.xlu0 %695
        %697 = vrot.lane.b32.xlu0 %v591, 120
        %v698 = vpop.permute.xlu0 %697
        %699 = vrot.lane.b32.xlu0 %v594, 120
        %v700 = vpop.permute.xlu0 %699
        %v701 = vsel %vm627, %v696, 0
        %v703 = vsel %vm627, %v698, 0
        %v705 = vsel %vm627, %v700, 0
        %707 = vmatpush.xpose.msra.mxu0 0.0
        %708 = vmatpush.xpose.msra.mxu0 0.0
        %709 = vmatpush.xpose.msra.mxu0 0.0
        %710 = vmatpush.xpose.msra.mxu0 0.0
        %711 = vmatpush.xpose.msra.mxu0 0.0
        %712 = vmatpush.xpose.msra.mxu0 0.0
        %713 = vmatpush.xpose.msra.mxu0 0.0
        %714 = vmatpush.xpose.msra.mxu0 0.0
        %715 = vmatpush.xpose.msra.mxu0 0.0
        %716 = vmatpush.xpose.msra.mxu0 0.0
        %717 = vmatpush.xpose.msra.mxu0 0.0
        %718 = vmatpush.xpose.msra.mxu0 0.0
        %719 = vmatpush.xpose.msra.mxu0 0.0
        %720 = vmatpush.xpose.msra.mxu0 0.0
        %721 = vmatpush.xpose.msra.mxu0 %v705
        %722 = vmatpush.xpose.msra.mxu0 %v703
        %723 = vmatmul.f32.gmra.mxu0 %v701
        %v724 = vpop.f32.mrf.mxu0
        %v725 = vadd.f32 0.0, %v724
        %726 = vdwg.mxu0
        %v727 = vsel %vm657, %v725, -inf
        %728 = vmax.xlane.f32.xlu0 %v727
        %v729 = vpop.xlane.xlu0 %728
        %v730 = vsub.f32 %v725, %v729
        %v731 = vmul.f32 %v730, 1.442695
        %v732 = vpow.pop %v731
        %v733 = vsel %vm657, %v732, 0.0
        %734 = vadd.xlane.f32.xlu0 %v733
        %v735 = vpop.xlane.xlu0 %734
        %v736 = vrcp.pop %v735
        %v737 = vmul.f32 %v732, %v736
        %v738 = vmul.f32 %v737, 0.25
        %v739 = vld [vmem:[%s522] sm:$0xff]
        %v740 = vadd.f32 %v739, %v738
        %741 = vst.msk [vmem:[%s522] sm:$0xff] %vm657, %v740
        %744 = vrot.lane.b32.xlu0 %v622, 120
        %v745 = vpop.permute.xlu0 %744
        %746 = vrot.lane.b32.xlu0 %v625, 120
        %v747 = vpop.permute.xlu0 %746
        %v751 = vsel %vm657, %v737, 0
        %753 = vmatpush.msra.mxu0 0.0
        %754 = vmatpush.msra.mxu0 0.0
        %755 = vmatpush.msra.mxu0 0.0
        %756 = vmatpush.msra.mxu0 0.0
        %757 = vmatpush.msra.mxu0 0.0
        %758 = vmatpush.msra.mxu0 0.0
        %759 = vmatpush.msra.mxu0 0.0
        %760 = vmatpush.msra.mxu0 0.0
        %761 = vmatpush.msra.mxu0 0.0
        %762 = vmatpush.msra.mxu0 0.0
        %763 = vmatpush.msra.mxu0 0.0
        %764 = vmatpush.msra.mxu0 0.0
        %765 = vmatpush.msra.mxu0 0.0
        %766 = vmatpush.msra.mxu0 0.0
        %767 = vmatpush.msra.mxu0 %v747
        %768 = vmatpush.msra.mxu0 %v745
        %769 = vmatmul.f32.gmra.mxu0 %v751
        %v770 = vpop.f32.mrf.mxu0
        %v771 = vadd.f32 0.0, %v770
        %772 = vdwg.mxu0
        %774 = vrot.lane.b32.xlu0 %v771, 8
        %v775 = vpop.permute.xlu0 %774
        %vm777 = vcmask 130112
        %778 = vst.msk [vmem:[#allocation2] sm:$0xff] %vm777, %v775
        %779 = vrot.lane.b32.xlu0 %v557, 112
        %v780 = vpop.permute.xlu0 %779
        %781 = vrot.lane.b32.xlu0 %v591, 112
        %v782 = vpop.permute.xlu0 %781
        %783 = vrot.lane.b32.xlu0 %v594, 112
        %v784 = vpop.permute.xlu0 %783
        %v785 = vsel %vm627, %v780, 0
        %v787 = vsel %vm627, %v782, 0
        %v789 = vsel %vm627, %v784, 0
        %791 = vmatpush.xpose.msra.mxu0 0.0
        %792 = vmatpush.xpose.msra.mxu0 0.0
        %793 = vmatpush.xpose.msra.mxu0 0.0
        %794 = vmatpush.xpose.msra.mxu0 0.0
        %795 = vmatpush.xpose.msra.mxu0 0.0
        %796 = vmatpush.xpose.msra.mxu0 0.0
        %797 = vmatpush.xpose.msra.mxu0 0.0
        %798 = vmatpush.xpose.msra.mxu0 0.0
        %799 = vmatpush.xpose.msra.mxu0 0.0
        %800 = vmatpush.xpose.msra.mxu0 0.0
        %801 = vmatpush.xpose.msra.mxu0 0.0
        %802 = vmatpush.xpose.msra.mxu0 0.0
        %803 = vmatpush.xpose.msra.mxu0 0.0
        %804 = vmatpush.xpose.msra.mxu0 0.0
        %805 = vmatpush.xpose.msra.mxu0 %v789
        %806 = vmatpush.xpose.msra.mxu0 %v787
        %807 = vmatmul.f32.gmra.mxu0 %v785
        %v808 = vpop.f32.mrf.mxu0
        %v809 = vadd.f32 0.0, %v808
        %810 = vdwg.mxu0
        %v811 = vsel %vm657, %v809, -inf
        %812 = vmax.xlane.f32.xlu0 %v811
        %v813 = vpop.xlane.xlu0 %812
        %v814 = vsub.f32 %v809, %v813
        %v815 = vmul.f32 %v814, 1.442695
        %v816 = vpow.pop %v815
        %v817 = vsel %vm657, %v816, 0.0
        %818 = vadd.xlane.f32.xlu0 %v817
        %v819 = vpop.xlane.xlu0 %818
        %v820 = vrcp.pop %v819
        %v821 = vmul.f32 %v816, %v820
        %v822 = vmul.f32 %v821, 0.25
        %v823 = vld [vmem:[%s522] sm:$0xff]
        %v824 = vadd.f32 %v823, %v822
        %825 = vst.msk [vmem:[%s522] sm:$0xff] %vm657, %v824
        %826 = vrot.lane.b32.xlu0 %v622, 112
        %v827 = vpop.permute.xlu0 %826
        %828 = vrot.lane.b32.xlu0 %v625, 112
        %v829 = vpop.permute.xlu0 %828
        %v833 = vsel %vm657, %v821, 0
        %835 = vmatpush.msra.mxu0 0.0
        %836 = vmatpush.msra.mxu0 0.0
        %837 = vmatpush.msra.mxu0 0.0
        %838 = vmatpush.msra.mxu0 0.0
        %839 = vmatpush.msra.mxu0 0.0
        %840 = vmatpush.msra.mxu0 0.0
        %841 = vmatpush.msra.mxu0 0.0
        %842 = vmatpush.msra.mxu0 0.0
        %843 = vmatpush.msra.mxu0 0.0
        %844 = vmatpush.msra.mxu0 0.0
        %845 = vmatpush.msra.mxu0 0.0
        %846 = vmatpush.msra.mxu0 0.0
        %847 = vmatpush.msra.mxu0 0.0
        %848 = vmatpush.msra.mxu0 0.0
        %849 = vmatpush.msra.mxu0 %v829
        %850 = vmatpush.msra.mxu0 %v827
        %851 = vmatmul.f32.gmra.mxu0 %v833
        %v852 = vpop.f32.mrf.mxu0
        %v853 = vadd.f32 0.0, %v852
        %854 = vdwg.mxu0
        %856 = vrot.lane.b32.xlu0 %v853, 16
        %v857 = vpop.permute.xlu0 %856
        %vm859 = vcmask 195712
        %860 = vst.msk [vmem:[#allocation2] sm:$0xff] %vm859, %v857
        %861 = vrot.lane.b32.xlu0 %v557, 104
        %v862 = vpop.permute.xlu0 %861
        %863 = vrot.lane.b32.xlu0 %v591, 104
        %v864 = vpop.permute.xlu0 %863
        %865 = vrot.lane.b32.xlu0 %v594, 104
        %v866 = vpop.permute.xlu0 %865
        %v867 = vsel %vm627, %v862, 0
        %v869 = vsel %vm627, %v864, 0
        %v871 = vsel %vm627, %v866, 0
        %873 = vmatpush.xpose.msra.mxu0 0.0
        %874 = vmatpush.xpose.msra.mxu0 0.0
        %875 = vmatpush.xpose.msra.mxu0 0.0
        %876 = vmatpush.xpose.msra.mxu0 0.0
        %877 = vmatpush.xpose.msra.mxu0 0.0
        %878 = vmatpush.xpose.msra.mxu0 0.0
        %879 = vmatpush.xpose.msra.mxu0 0.0
        %880 = vmatpush.xpose.msra.mxu0 0.0
        %881 = vmatpush.xpose.msra.mxu0 0.0
        %882 = vmatpush.xpose.msra.mxu0 0.0
        %883 = vmatpush.xpose.msra.mxu0 0.0
        %884 = vmatpush.xpose.msra.mxu0 0.0
        %885 = vmatpush.xpose.msra.mxu0 0.0
        %886 = vmatpush.xpose.msra.mxu0 0.0
        %887 = vmatpush.xpose.msra.mxu0 %v871
        %888 = vmatpush.xpose.msra.mxu0 %v869
        %889 = vmatmul.f32.gmra.mxu0 %v867
        %v890 = vpop.f32.mrf.mxu0
        %v891 = vadd.f32 0.0, %v890
        %892 = vdwg.mxu0
        %v893 = vsel %vm657, %v891, -inf
        %894 = vmax.xlane.f32.xlu0 %v893
        %v895 = vpop.xlane.xlu0 %894
        %v896 = vsub.f32 %v891, %v895
        %v897 = vmul.f32 %v896, 1.442695
        %v898 = vpow.pop %v897
        %v899 = vsel %vm657, %v898, 0.0
        %900 = vadd.xlane.f32.xlu0 %v899
        %v901 = vpop.xlane.xlu0 %900
        %v902 = vrcp.pop %v901
        %v903 = vmul.f32 %v898, %v902
        %v904 = vmul.f32 %v903, 0.25
        %v905 = vld [vmem:[%s522] sm:$0xff]
        %v906 = vadd.f32 %v905, %v904
        %907 = vst.msk [vmem:[%s522] sm:$0xff] %vm657, %v906
        %908 = vrot.lane.b32.xlu0 %v622, 104
        %v909 = vpop.permute.xlu0 %908
        %910 = vrot.lane.b32.xlu0 %v625, 104
        %v911 = vpop.permute.xlu0 %910
        %v915 = vsel %vm657, %v903, 0
        %917 = vmatpush.msra.mxu0 0.0
        %918 = vmatpush.msra.mxu0 0.0
        %919 = vmatpush.msra.mxu0 0.0
        %920 = vmatpush.msra.mxu0 0.0
        %921 = vmatpush.msra.mxu0 0.0
        %922 = vmatpush.msra.mxu0 0.0
        %923 = vmatpush.msra.mxu0 0.0
        %924 = vmatpush.msra.mxu0 0.0
        %925 = vmatpush.msra.mxu0 0.0
        %926 = vmatpush.msra.mxu0 0.0
        %927 = vmatpush.msra.mxu0 0.0
        %928 = vmatpush.msra.mxu0 0.0
        %929 = vmatpush.msra.mxu0 0.0
        %930 = vmatpush.msra.mxu0 0.0
        %931 = vmatpush.msra.mxu0 %v911
        %932 = vmatpush.msra.mxu0 %v909
        %933 = vmatmul.f32.gmra.mxu0 %v915
        %v934 = vpop.f32.mrf.mxu0
        %v935 = vadd.f32 0.0, %v934
        %936 = vdwg.mxu0
        %938 = vrot.lane.b32.xlu0 %v935, 24
        %v939 = vpop.permute.xlu0 %938
        %vm941 = vcmask 261312
        %942 = vst.msk [vmem:[#allocation2] sm:$0xff] %vm941, %v939
        %v943 = vld [vmem:[#allocation2] sm:$0xff]
        %v944 = vld [vmem:[#allocation12] sm:$0xff]
        %v945 = vld [vmem:[#allocation12 + $0x8] sm:$0xff]
        %v946 = vld [vmem:[#allocation12 + $0x10] sm:$0xff]
        %v947 = vld [vmem:[#allocation12 + $0x18] sm:$0xff]
        %v948 = vld [vmem:[%s9] sm:$0x1]
        %v950 = vperm.slane %v948, 0
        %v953 = vsel %vm535, %v943, 0
        %955 = vmatpush.msra.mxu0 0.0
        %956 = vmatpush.msra.mxu0 0.0
        %957 = vmatpush.msra.mxu0 0.0
        %958 = vmatpush.msra.mxu0 0.0
        %959 = vmatpush.msra.mxu0 0.0
        %960 = vmatpush.msra.mxu0 0.0
        %961 = vmatpush.msra.mxu0 0.0
        %962 = vmatpush.msra.mxu0 0.0
        %963 = vmatpush.msra.mxu0 0.0
        %964 = vmatpush.msra.mxu0 0.0
        %965 = vmatpush.msra.mxu0 0.0
        %966 = vmatpush.msra.mxu0 0.0
        %967 = vmatpush.msra.mxu0 %v947
        %968 = vmatpush.msra.mxu0 %v946
        %969 = vmatpush.msra.mxu0 %v945
        %970 = vmatpush.msra.mxu0 %v944
        %971 = vmatmul.f32.gmra.mxu0 %v953
        %v972 = vpop.f32.mrf.mxu0
        %v973 = vadd.f32 %v950, %v972
        %974 = vdwg.mxu0
        %v975 = vsel %vm535, %v973, -inf
        %v976 = vrot.slane %v975, 4
        %v977 = vmax.f32 %v975, %v976
        %v978 = vrot.slane %v977, 2
        %v979 = vmax.f32 %v977, %v978
        %v980 = vrot.slane %v979, 1
        %v981 = vmax.f32 %v979, %v980
        %v982 = vsub.f32 %v973, %v981
        %v983 = vmul.f32 %v982, 1.442695
        %v984 = vpow.pop %v983
        %v985 = vsel %vm535, %v984, 0.0
        %v986 = vrot.slane %v985, 4
        %v987 = vadd.f32 %v985, %v986
        %v988 = vrot.slane %v987, 2
        %v989 = vadd.f32 %v987, %v988
        %v990 = vrot.slane %v989, 1
        %v991 = vadd.f32 %v989, %v990
        %v992 = vrcp.pop %v991
        %v993 = vmul.f32 %v984, %v992
        %994 = vst.msk [vmem:[%s515] sm:$0xff] %vm535, %v993
        %s995 = sand.u32 %s265, 1
        %s996 = scalar_lea.sflag [#allocation5], %s995
        %s997 = sand.u32 %s265, 1
        %s998 = smul.addr %s997, 8
        %s999 = scalar_lea.vmem [#allocation14], %s998
        %s1000 = sand.u32 %s291, 1
        %s1001 = scalar_lea.sflag [#allocation16], %s1000
        %s1002 = sand.u32 %s291, 1
        %s1003 = smul.addr %s1002, 8
        %s1004 = scalar_lea.vmem [#allocation15], %s1003
        // Predicated region
        $region85: #{tpu_custom_call.1} parent=59 // pred_check
          %p1005 = pneg %p275
        $region86: #{tpu_custom_call.1} parent=59 // pred_check_branch
          %1007 = sbr.rel (%p1005) target = $region88
        $region87: #{tpu_custom_call.1} parent=59 // pred_region
          %1009 = vsyncadd %s996, 0
          %s1010 = smul.addr %s37, 8
          %s1011 = scalar_lea.hbm %s10, %s1010
          %s1013 = sshll.u32 %s999, 4
          %s1014 = int_to_ptr.vmem [resolvable:$true] %s1013
          %s1015 = sshll.u32 %s1011, 4
          %s1016 = int_to_ptr.hbm [resolvable:$true] %s1015
          %1018 = dma.vmem_to_hbm [thread:$0]  %s1014, 128, %s1016, %s996
        $region88: #{tpu_custom_call.1} parent=59 // pred_fallthru
          _
        // Predicated region
        $region89: #{tpu_custom_call.1} parent=59 // pred_check
          %p1019 = pneg %p301
        $region90: #{tpu_custom_call.1} parent=59 // pred_check_branch
          %1021 = sbr.rel (%p1019) target = $region92
        $region91: #{tpu_custom_call.1} parent=59 // pred_region
          %1023 = vsyncadd %s1001, 0
          %s1024 = smul.addr %s37, 8
          %s1025 = scalar_lea.hbm %s11, %s1024
          %s1027 = sshll.u32 %s1004, 4
          %s1028 = int_to_ptr.vmem [resolvable:$true] %s1027
          %s1029 = sshll.u32 %s1025, 4
          %s1030 = int_to_ptr.hbm [resolvable:$true] %s1029
          %1032 = dma.vmem_to_hbm [thread:$0]  %s1028, 128, %s1030, %s1001
        $region92: #{tpu_custom_call.1} parent=59 // pred_fallthru
          _
      $region60: #{tpu_custom_call.1} parent=5 // pred_fallthru
        _
      %p1033 = scmp.le.s32.totalorder 2, %s32
      // Predicated region
      $region93: #{tpu_custom_call.1} parent=5 // pred_check
        %p1034 = pneg %p1033
      $region94: #{tpu_custom_call.1} parent=5 // pred_check_branch
        %1036 = sbr.rel (%p1034) target = $region96
      $region95: #{tpu_custom_call.1} parent=5 // pred_region
        %s1037 = ssub.s32 %s32, 2
        // Predicated region
        $region97: #{tpu_custom_call.1} parent=95 // pred_check
          %p1038 = pneg %p281
        $region98: #{tpu_custom_call.1} parent=95 // pred_check_branch
          %1040 = sbr.rel (%p1038) target = $region100
        $region99: #{tpu_custom_call.1} parent=95 // pred_region
          %s1041 = sand.u32 %s266, 1
          %s1042 = scalar_lea.sflag [#allocation5], %s1041
          %s1043 = sand.u32 %s266, 1
          %s1044 = smul.addr %s1043, 8
          %s1045 = scalar_lea.vmem [#allocation14], %s1044
          %1047 = dma.done %s1042, 128
        $region100: #{tpu_custom_call.1} parent=95 // pred_fallthru
          _
        // Predicated region
        $region101: #{tpu_custom_call.1} parent=95 // pred_check
          %p1048 = pneg %p307
        $region102: #{tpu_custom_call.1} parent=95 // pred_check_branch
          %1050 = sbr.rel (%p1048) target = $region104
        $region103: #{tpu_custom_call.1} parent=95 // pred_region
          %s1051 = sand.u32 %s292, 1
          %s1052 = scalar_lea.sflag [#allocation16], %s1051
          %s1053 = sand.u32 %s292, 1
          %s1054 = smul.addr %s1053, 8
          %s1055 = scalar_lea.vmem [#allocation15], %s1054
          %1057 = dma.done %s1052, 128
        $region104: #{tpu_custom_call.1} parent=95 // pred_fallthru
          _
      $region96: #{tpu_custom_call.1} parent=5 // pred_fallthru
        _
    $region6: #{tpu_custom_call.1} parent=1 // loop_footer
      %s36 = sadd.s32 1, %s32
    $region7: #{tpu_custom_call.1} parent=1 // loop_footer_branch
      %31 = sbr.rel target = $region3
    $region8: #{tpu_custom_call.1} parent=1 // loop_exit
      _
    %1058 = vsyncpa [#allocation4], 1
    %s1059 = scalar_lea.sflag [#allocation4], 1
    %1060 = vsyncpa %s1059, 1
    %1061 = vsyncpa [#allocation7], 1
    %s1062 = scalar_lea.sflag [#allocation7], 1
    %1063 = vsyncpa %s1062, 1
    %1064 = vsyncpa [#allocation10], 1
    %1065 = vsyncpa [#allocation13], 1
    %1066 = vsyncpa [#allocation5], 1
    %s1067 = scalar_lea.sflag [#allocation5], 1
    %1068 = vsyncpa %s1067, 1
    %1069 = vsyncpa [#allocation16], 1
    %s1070 = scalar_lea.sflag [#allocation16], 1
    %1071 = vsyncpa %s1070, 1

</llo_original>
